<compile_context>
chip_gen: v6e
topology: v6e:2x2x1
jax: 0.10.0
libtpu: 0.0.40
codegen_flags: <defaults>
</compile_context>

<pallas_src>
import functools

import jax
import jax.numpy as jnp
from jax import lax
from jax.experimental import pallas as pl
from jax.experimental.pallas import tpu as pltpu


def _round_up(v, m):
    return ((v + m - 1) // m) * m


def _coupling_kernel(a_ref, inb_ref, bias_ref, w1_ref, b1_ref, w2_ref, b2_ref,
                     w3_ref, e3s_ref, out_ref, *, n_ch, half, stride, np_, nq,
                     tile_h, img_h, img_w, cast_bf16):
    # a_ref   : (1, 1, Ca, NA)   2-row/col padded in_a tile, flat (stride S)
    # inb_ref : (1, 1, Cb, NQp)  second half of channels, flat (stride S)
    # bias_ref: (1, C, NQp)      (b3 + value-1-pad correction) * exp(3*scale)
    # w1_ref  : (F, K1p), b1_ref: (F, 1)
    # w2_ref  : (F, F),   b2_ref: (F, 1)
    # w3_ref  : (K3p, F)         ZeroConv taps stacked on the M axis
    # e3s_ref : (C, 1)           exp(3*scale)
    # out_ref : (1, 1, Cb, NQp)
    a2 = a_ref[0, 0]                                            # (Ca, NA)
    ca = a2.shape[0]

    # ---- in-kernel im2col: nine static lane-shifted slices of the padded
    #      in_a tile, stacked on sublanes (K axis of the conv1 matmul). ----
    taps = [a2[:, dy * stride + dx:dy * stride + dx + np_]
            for dy in range(3) for dx in range(3)]              # 9 x (Ca, NP)
    k1, k1p = 9 * ca, w1_ref.shape[1]
    if k1p > k1:
        taps.append(jnp.zeros((k1p - k1, np_), a2.dtype))
    patches = jnp.concatenate(taps, axis=0)                     # (K1p, NP)

    w1 = w1_ref[...]
    w2 = w2_ref[...]
    w3 = w3_ref[...]
    if cast_bf16:            # v6e/v7x MXU-native path (relax the tolerance!)
        patches = patches.astype(jnp.bfloat16)
        w1 = w1.astype(jnp.bfloat16)
        w2 = w2.astype(jnp.bfloat16)
        w3 = w3.astype(jnp.bfloat16)

    # conv1 (3x3, SAME) as one matmul over the in-kernel im2col patches.
    h1 = jnp.dot(w1, patches, preferred_element_type=jnp.float32)
    h1 = jnp.maximum(h1 + b1_ref[...], 0.0)                     # (F, NP)

    # conv2 (1x1).
    h1c = h1.astype(jnp.bfloat16) if cast_bf16 else h1
    h2 = jnp.dot(w2, h1c, preferred_element_type=jnp.float32)
    h2 = jnp.maximum(h2 + b2_ref[...], 0.0)                     # (F, NP)

    # ---- interior mask, generated in-kernel (no DMA'd mask array).
    # row = floor(p / S) via a float multiply; the +1e-6 margin on the
    # reciprocal guarantees an exact integer result for p up to ~8e5. ----
    pos = lax.broadcasted_iota(jnp.int32, (1, np_), 1).astype(jnp.float32)
    row = jnp.floor(pos * ((1.0 + 1e-6) / stride))
    col = pos - row * stride
    row_glob = row + (pl.program_id(1) * tile_h).astype(jnp.float32)
    valid = ((row_glob >= 1.0) & (row_glob <= float(img_h))
             & (col >= 1.0) & (col <= float(img_w)))
    h2 = jnp.where(valid, h2, 0.0)                              # zero-pad grid

    # ZeroConv 3x3: one stacked matmul, then 9 static-offset slice-adds of
    # tiny (C, NQp) blocks (taps are simple lane offsets thanks to stride S).
    h2c = h2.astype(jnp.bfloat16) if cast_bf16 else h2
    tap_out = jnp.dot(w3, h2c, preferred_element_type=jnp.float32)  # (K3p, NP)
    acc = None
    for dy in range(3):
        for dx in range(3):
            k = dy * 3 + dx
            off = dy * stride + dx
            contrib = tap_out[k * n_ch:(k + 1) * n_ch, off:off + nq]
            acc = contrib if acc is None else acc + contrib         # (C, NQp)

    # (conv3_ones + b3) * e3s  ==  conv3_zero * e3s + (b3 + corr) * e3s
    net = acc * e3s_ref[...] + bias_ref[0]                          # (C, NQp)
    log_s = net[:half]
    t = net[half:]
    s = jax.nn.sigmoid(log_s + 2.0)
    out_ref[0, 0] = ((inb_ref[0, 0] + t) * s).astype(out_ref.dtype)


def _vmem_step_bytes(tile_h, stride, ca, cb, c, f):
    """Rough per-grid-step VMEM footprint (blocks + weights + intermediates)."""
    nqp = _round_up(tile_h * stride, 128)
    np_ = _round_up(nqp + 2 * stride + 2, 128)
    na = np_ + _round_up(2 * stride + 2, 128)
    k1p = _round_up(9 * ca, 8)
    k3p = _round_up(9 * c, 8)
    blocks = 2 * (ca * na + cb * nqp + c * nqp + cb * nqp)   # double-buffered
    weights = 2 * (f * k1p + f + f * f + f + k3p * f + c)
    inter = (k1p + 2 * f + k3p + 4 * c) * np_
    return 4 * (blocks + weights + inter)


def _pick_tile_h(h, stride, ca, cb, c, f, budget_bytes):
    best = None
    for th in range(1, h + 1):
        if h % th:
            continue
        if _vmem_step_bytes(th, stride, ca, cb, c, f) <= budget_bytes:
            best = th
    return best if best is not None else 1


@functools.partial(jax.jit, static_argnames=("tile_h", "use_bf16"))
def affine_coupling_forward(x_nchw, params, tile_h=None, use_bf16=False):
    """x_nchw: (B, C, H, W) float32.  Returns (B, C, H, W)."""
    B, C, H, W = x_nchw.shape
    assert C % 2 == 0, "AffineCoupling expects an even channel count"
    half = C // 2
    Ca, Cb = half, C - half
    w1, b1, w2, b2, w3, b3, scale = (params["w1"], params["b1"], params["w2"],
                                     params["b2"], params["w3"], params["b3"],
                                     params["scale"])
    Fh = w1.shape[3]

    # ---- static tiling: one shared flat-spatial stride S = W + 4 ----
    S = W + 4                              # width of the 2-col-padded in_a rows
    if tile_h is None:
        TH = _pick_tile_h(H, S, Ca, Cb, C, Fh, budget_bytes=24 * 2**20)
    else:
        TH = min(int(tile_h), H)
        while H % TH:
            TH -= 1
    NT = H // TH
    NQ = TH * S                            # flat output positions per tile
    NQp = _round_up(NQ, 128)               # lane-dense output width
    NP = _round_up(NQp + 2 * S + 2, 128)   # h2/patch width (covers conv3 taps)
    NA = NP + _round_up(2 * S + 2, 128)    # in_a tile width (covers conv1 taps)
    K1, K1p = 9 * Ca, _round_up(9 * Ca, 8)
    K3p = _round_up(9 * C, 8)

    in_a = x_nchw[:, :Ca]                  # (B, Ca, H, W)
    in_b = x_nchw[:, Ca:]                  # (B, Cb, H, W)

    # ---- conv1 input: 2-row/col padded in_a, row-tiled, flattened (stride S) ----
    a_pp = jnp.pad(in_a, ((0, 0), (0, 0), (2, 2), (2, 2)))     # (B, Ca, H+4, S)
    if NT == 1:
        a_tiles = a_pp.reshape(B, 1, Ca, (H + 4) * S)
    else:
        a_tiles = jnp.stack([a_pp[:, :, t * TH:t * TH + TH + 4, :]
                             for t in range(NT)], axis=1)
        a_tiles = a_tiles.reshape(B, NT, Ca, (TH + 4) * S)
    a_tiles = jnp.pad(a_tiles,
                      ((0, 0), (0, 0), (0, 0), (0, NA - (TH + 4) * S)))

    # ---- weights in matmul form ----
    w1r = jnp.transpose(w1, (3, 0, 1, 2)).reshape(Fh, K1)      # (F, 9*Ca)
    w1r = jnp.pad(w1r, ((0, 0), (0, K1p - K1)))
    b1c = b1.reshape(Fh, 1)
    w2c = w2.T                                                 # (F_out, F_in)
    b2c = b2.reshape(Fh, 1)
    w3s = jnp.transpose(w3, (0, 1, 3, 2)).reshape(9 * C, Fh)   # row = tap*C + c
    w3s = jnp.pad(w3s, ((0, K3p - 9 * C), (0, 0)))
    e3 = jnp.exp(scale * 3.0).reshape(-1)                      # (C,)
    e3s = e3.reshape(C, 1)

    # ---- fold ZeroConv value-1 padding into a precomputed per-pixel bias ----
    w3_sum = w3.sum(axis=2)                                    # (3, 3, C)
    ys, xs = jnp.arange(H), jnp.arange(W)
    corr = jnp.zeros((H, W, C), jnp.float32)
    for dy in range(3):
        for dx in range(3):
            row_pad = (ys + dy - 1 < 0) | (ys + dy - 1 >= H)
            col_pad = (xs + dx - 1 < 0) | (xs + dx - 1 >= W)
            outside = (row_pad[:, None] | col_pad[None, :]).astype(jnp.float32)
            corr = corr + outside[:, :, None] * w3_sum[dy, dx][None, None, :]
    net_bias = (corr + b3.reshape(1, 1, C)) * e3.reshape(1, 1, C)   # (H, W, C)
    bias_map = jnp.transpose(net_bias, (2, 0, 1)).reshape(C, NT, TH, W)
    bias_map = jnp.pad(bias_map, ((0, 0), (0, 0), (0, 0), (0, S - W)))
    bias_map = jnp.transpose(bias_map, (1, 0, 2, 3)).reshape(NT, C, NQ)
    bias_map = jnp.pad(bias_map, ((0, 0), (0, 0), (0, NQp - NQ)))

    # ---- in_b in the tiled flat (lane-dense) layout ----
    inb = in_b.reshape(B, Cb, NT, TH, W)
    inb = jnp.pad(inb, ((0, 0), (0, 0), (0, 0), (0, 0), (0, S - W)))
    inb = jnp.transpose(inb, (0, 2, 1, 3, 4)).reshape(B, NT, Cb, NQ)
    inb = jnp.pad(inb, ((0, 0), (0, 0), (0, 0), (0, NQp - NQ)))

    kernel = functools.partial(
        _coupling_kernel, n_ch=C, half=half, stride=S, np_=NP, nq=NQp,
        tile_h=TH, img_h=H, img_w=W, cast_bf16=use_bf16)

    vmem_limit = int(min(48 * 2**20,
                         max(32 * 2**20,
                             2 * _vmem_step_bytes(TH, S, Ca, Cb, C, Fh))))

    out_tiles = pl.pallas_call(
        kernel,
        out_shape=jax.ShapeDtypeStruct((B, NT, Cb, NQp), x_nchw.dtype),
        grid_spec=pltpu.PrefetchScalarGridSpec(
            num_scalar_prefetch=0,
            grid=(B, NT),
            in_specs=[
                pl.BlockSpec((1, 1, Ca, NA), lambda b, t: (b, t, 0, 0)),
                pl.BlockSpec((1, 1, Cb, NQp), lambda b, t: (b, t, 0, 0)),
                pl.BlockSpec((1, C, NQp), lambda b, t: (t, 0, 0)),
                pl.BlockSpec((Fh, K1p), lambda b, t: (0, 0)),
                pl.BlockSpec((Fh, 1), lambda b, t: (0, 0)),
                pl.BlockSpec((Fh, Fh), lambda b, t: (0, 0)),
                pl.BlockSpec((Fh, 1), lambda b, t: (0, 0)),
                pl.BlockSpec((K3p, Fh), lambda b, t: (0, 0)),
                pl.BlockSpec((C, 1), lambda b, t: (0, 0)),
            ],
            out_specs=pl.BlockSpec((1, 1, Cb, NQp), lambda b, t: (b, t, 0, 0)),
        ),
        compiler_params=pltpu.CompilerParams(
            dimension_semantics=("parallel", "parallel"),
            vmem_limit_bytes=vmem_limit),
    )(a_tiles, inb, bias_map, w1r, b1c, w2c, b2c, w3s, e3s)

    out_b = out_tiles[..., :NQ].reshape(B, NT, Cb, TH, S)[..., :W]
    out_b = jnp.transpose(out_b, (0, 2, 1, 3, 4)).reshape(B, Cb, H, W)
    return jnp.concatenate([in_a, out_b], axis=1)


def reference_forward(x_nchw, params):
    """Pure-JAX reference of the PyTorch forward (for validation)."""
    B, C, H, W = x_nchw.shape
    Ca = C // 2
    w1, b1, w2, b2, w3, b3, scale = (params["w1"], params["b1"], params["w2"],
                                     params["b2"], params["w3"], params["b3"],
                                     params["scale"])
    in_a = x_nchw[:, :Ca]
    in_b = x_nchw[:, Ca:]
    a = jnp.transpose(in_a, (0, 2, 3, 1))
    dn = ("NHWC", "HWIO", "NHWC")
    h = lax.conv_general_dilated(a, w1, (1, 1), "SAME",
                                 dimension_numbers=dn) + b1
    h = jax.nn.relu(h)
    h = jnp.einsum("bhwc,cf->bhwf", h, w2) + b2
    h = jax.nn.relu(h)
    hp = jnp.pad(h, ((0, 0), (1, 1), (1, 1), (0, 0)), constant_values=1.0)
    net = lax.conv_general_dilated(hp, w3, (1, 1), "VALID",
                                   dimension_numbers=dn) + b3
    net = net * jnp.exp(scale * 3.0)
    log_s, t = net[..., :Ca], net[..., Ca:]
    s = jax.nn.sigmoid(log_s + 2.0)
    out_b = (jnp.transpose(in_b, (0, 2, 3, 1)) + t) * s
    return jnp.concatenate([in_a, jnp.transpose(out_b, (0, 3, 1, 2))], axis=1)


def init_params(key, in_channel, filter_size):
    """Deterministic parameter init (shapes per the PyTorch __init__).

    NOTE: PyTorch inits the ZeroConv2d weight/scale to 0 (making its output
    trivially zero); we use small random values instead so the final conv /
    scaling path is actually exercised.  Forward semantics are unchanged.
    """
    Ca = in_channel // 2
    F_ = filter_size
    k1, k2, k3, k4 = jax.random.split(key, 4)
    return {
        "w1": 0.05 * jax.random.normal(k1, (3, 3, Ca, F_), jnp.float32),
        "b1": jnp.zeros((1, F_), jnp.float32),
        "w2": 0.05 * jax.random.normal(k2, (F_, F_), jnp.float32),
        "b2": jnp.zeros((1, F_), jnp.float32),
        "w3": 0.05 * jax.random.normal(k3, (3, 3, F_, in_channel), jnp.float32),
        "b3": jnp.zeros((1, in_channel), jnp.float32),
        "scale": 0.1 * jax.random.normal(k4, (1, in_channel), jnp.float32),
    }


if __name__ == "__main__":
    B, C, H, W = 2, 4, 16, 16
    FILTER = 32

    key = jax.random.PRNGKey(0)
    kx, kp = jax.random.split(key)
    x = jax.random.normal(kx, (B, C, H, W), jnp.float32)
    params = init_params(kp, C, FILTER)

    ref = jax.block_until_ready(reference_forward(x, params))

    # Default: auto tile (TH = H -> grid (B, 1) = 2 parallel steps).
    out = jax.block_until_ready(affine_coupling_forward(x, params))
    assert out.shape == (B, C, H, W)
    err = float(jnp.max(jnp.abs(out - ref)))
    assert err < 1e-4, f"mismatch vs reference (auto tile): {err}"

    # Also exercise the multi-row-tile (halo / masked) path.
    out2 = jax.block_until_ready(affine_coupling_forward(x, params, tile_h=8))
    err2 = float(jnp.max(jnp.abs(out2 - ref)))
    assert err2 < 1e-4, f"mismatch vs reference (tile_h=8): {err2}"

    print("KERNEL_OK")
</pallas_src>

<mosaic_0001>
module attributes {stable_mosaic.version = 11 : i64} {
  func.func @_coupling_kernel(%arg0: i32, %arg1: i32, %arg2: memref<1x1x2x640xf32, #tpu.memory_space<vmem>>, %arg3: memref<1x1x2x384xf32, #tpu.memory_space<vmem>>, %arg4: memref<1x4x384xf32, #tpu.memory_space<vmem>>, %arg5: memref<32x24xf32, #tpu.memory_space<vmem>>, %arg6: memref<32x1xf32, #tpu.memory_space<vmem>>, %arg7: memref<32x32xf32, #tpu.memory_space<vmem>>, %arg8: memref<32x1xf32, #tpu.memory_space<vmem>>, %arg9: memref<40x32xf32, #tpu.memory_space<vmem>>, %arg10: memref<4x1xf32, #tpu.memory_space<vmem>>, %arg11: memref<1x1x2x384xf32, #tpu.memory_space<vmem>>) attributes {dimension_semantics = [#tpu.dimension_semantics<parallel>, #tpu.dimension_semantics<parallel>], iteration_bounds = array<i64: 2, 1>, scalar_prefetch = 0 : i64, scratch_operands = 0 : i64, tpu.core_type = #tpu.core_type<tc>, window_params = [{transform_indices = @transform_0, window_bounds = array<i64: 1, 1, 2, 640>}, {transform_indices = @transform_1, window_bounds = array<i64: 1, 1, 2, 384>}, {transform_indices = @transform_2, window_bounds = array<i64: 1, 4, 384>}, {pipeline_mode = #tpu.pipeline_mode<synchronous>, transform_indices = @transform_3, window_bounds = array<i64: 32, 24>}, {pipeline_mode = #tpu.pipeline_mode<synchronous>, transform_indices = @transform_4, window_bounds = array<i64: 32, 1>}, {pipeline_mode = #tpu.pipeline_mode<synchronous>, transform_indices = @transform_5, window_bounds = array<i64: 32, 32>}, {pipeline_mode = #tpu.pipeline_mode<synchronous>, transform_indices = @transform_6, window_bounds = array<i64: 32, 1>}, {pipeline_mode = #tpu.pipeline_mode<synchronous>, transform_indices = @transform_7, window_bounds = array<i64: 40, 32>}, {pipeline_mode = #tpu.pipeline_mode<synchronous>, transform_indices = @transform_8, window_bounds = array<i64: 4, 1>}, {transform_indices = @transform_9, window_bounds = array<i64: 1, 1, 2, 384>}]} {
    %c0 = arith.constant 0 : index
    %c0_0 = arith.constant 0 : index
    %c0_1 = arith.constant 0 : index
    %c0_2 = arith.constant 0 : index
    %0 = vector.load %arg2[%c0, %c0_0, %c0_1, %c0_2] : memref<1x1x2x640xf32, #tpu.memory_space<vmem>>, vector<1x1x2x640xf32>
    %1 = vector.shape_cast %0 : vector<1x1x2x640xf32> to vector<2x640xf32>
    %2 = vector.extract_strided_slice %1 {offsets = [0, 0], sizes = [2, 512], strides = [1, 1]} : vector<2x640xf32> to vector<2x512xf32>
    %3 = vector.extract_strided_slice %1 {offsets = [0, 1], sizes = [2, 512], strides = [1, 1]} : vector<2x640xf32> to vector<2x512xf32>
    %4 = vector.extract_strided_slice %1 {offsets = [0, 2], sizes = [2, 512], strides = [1, 1]} : vector<2x640xf32> to vector<2x512xf32>
    %5 = vector.extract_strided_slice %1 {offsets = [0, 20], sizes = [2, 512], strides = [1, 1]} : vector<2x640xf32> to vector<2x512xf32>
    %6 = vector.extract_strided_slice %1 {offsets = [0, 21], sizes = [2, 512], strides = [1, 1]} : vector<2x640xf32> to vector<2x512xf32>
    %7 = vector.extract_strided_slice %1 {offsets = [0, 22], sizes = [2, 512], strides = [1, 1]} : vector<2x640xf32> to vector<2x512xf32>
    %8 = vector.extract_strided_slice %1 {offsets = [0, 40], sizes = [2, 512], strides = [1, 1]} : vector<2x640xf32> to vector<2x512xf32>
    %9 = vector.extract_strided_slice %1 {offsets = [0, 41], sizes = [2, 512], strides = [1, 1]} : vector<2x640xf32> to vector<2x512xf32>
    %10 = vector.extract_strided_slice %1 {offsets = [0, 42], sizes = [2, 512], strides = [1, 1]} : vector<2x640xf32> to vector<2x512xf32>
    %cst = arith.constant 0.000000e+00 : f32
    %11 = vector.broadcast %cst : f32 to vector<6x512xf32>
    %12 = tpu.concatenate %2, %3, %4, %5, %6, %7, %8, %9, %10, %11 in 0 : vector<2x512xf32>, vector<2x512xf32>, vector<2x512xf32>, vector<2x512xf32>, vector<2x512xf32>, vector<2x512xf32>, vector<2x512xf32>, vector<2x512xf32>, vector<2x512xf32>, vector<6x512xf32> -> vector<24x512xf32>
    %c0_3 = arith.constant 0 : index
    %c0_4 = arith.constant 0 : index
    %13 = vector.load %arg5[%c0_3, %c0_4] : memref<32x24xf32, #tpu.memory_space<vmem>>, vector<32x24xf32>
    %c0_5 = arith.constant 0 : index
    %c0_6 = arith.constant 0 : index
    %14 = vector.load %arg7[%c0_5, %c0_6] : memref<32x32xf32, #tpu.memory_space<vmem>>, vector<32x32xf32>
    %c0_7 = arith.constant 0 : index
    %c0_8 = arith.constant 0 : index
    %15 = vector.load %arg9[%c0_7, %c0_8] : memref<40x32xf32, #tpu.memory_space<vmem>>, vector<40x32xf32>
    %cst_9 = arith.constant dense<0.000000e+00> : vector<32x512xf32>
    %16 = tpu.matmul %13, %12, %cst_9 {dimension_numbers = #tpu.dot_dimension_numbers<[1], [0], [0], [1], [0, 0, 1, 1], [], []>} : vector<32x24xf32>, vector<24x512xf32>, vector<32x512xf32> -> vector<32x512xf32>
    %c0_10 = arith.constant 0 : index
    %c0_11 = arith.constant 0 : index
    %17 = vector.load %arg6[%c0_10, %c0_11] : memref<32x1xf32, #tpu.memory_space<vmem>>, vector<32x1xf32>
    %18 = vector.broadcast %17 : vector<32x1xf32> to vector<32x512xf32>
    %19 = arith.addf %16, %18 : vector<32x512xf32>
    %cst_12 = arith.constant 0.000000e+00 : f32
    %20 = vector.broadcast %cst_12 : f32 to vector<32x512xf32>
    %21 = arith.maximumf %19, %20 : vector<32x512xf32>
    %cst_13 = arith.constant dense<0.000000e+00> : vector<32x512xf32>
    %22 = tpu.matmul %14, %21, %cst_13 {dimension_numbers = #tpu.dot_dimension_numbers<[1], [0], [0], [1], [0, 0, 1, 1], [], []>} : vector<32x32xf32>, vector<32x512xf32>, vector<32x512xf32> -> vector<32x512xf32>
    %c0_14 = arith.constant 0 : index
    %c0_15 = arith.constant 0 : index
    %23 = vector.load %arg8[%c0_14, %c0_15] : memref<32x1xf32, #tpu.memory_space<vmem>>, vector<32x1xf32>
    %24 = vector.broadcast %23 : vector<32x1xf32> to vector<32x512xf32>
    %25 = arith.addf %22, %24 : vector<32x512xf32>
    %cst_16 = arith.constant 0.000000e+00 : f32
    %26 = vector.broadcast %cst_16 : f32 to vector<32x512xf32>
    %27 = arith.maximumf %25, %26 : vector<32x512xf32>
    %28 = tpu.iota {dimensions = array<i32: 1>} : vector<1x512xi32>
    %29 = arith.sitofp %28 : vector<1x512xi32> to vector<1x512xf32>
    %cst_17 = arith.constant 0.0500000492 : f32
    %30 = vector.broadcast %cst_17 : f32 to vector<1x512xf32>
    %31 = arith.mulf %29, %30 : vector<1x512xf32>
    %32 = math.floor %31 : vector<1x512xf32>
    %cst_18 = arith.constant 2.000000e+01 : f32
    %33 = vector.broadcast %cst_18 : f32 to vector<1x512xf32>
    %34 = arith.mulf %32, %33 : vector<1x512xf32>
    %35 = arith.subf %29, %34 : vector<1x512xf32>
    %c16_i32 = arith.constant 16 : i32
    %36 = arith.muli %arg1, %c16_i32 : i32
    %37 = arith.sitofp %36 : i32 to f32
    %38 = vector.broadcast %37 : f32 to vector<1x512xf32>
    %39 = arith.addf %32, %38 : vector<1x512xf32>
    %cst_19 = arith.constant 1.000000e+00 : f32
    %40 = vector.broadcast %cst_19 : f32 to vector<1x512xf32>
    %41 = arith.cmpf oge, %39, %40 : vector<1x512xf32>
    %cst_20 = arith.constant 1.600000e+01 : f32
    %42 = vector.broadcast %cst_20 : f32 to vector<1x512xf32>
    %43 = arith.cmpf ole, %39, %42 : vector<1x512xf32>
    %44 = arith.andi %41, %43 : vector<1x512xi1>
    %cst_21 = arith.constant 1.000000e+00 : f32
    %45 = vector.broadcast %cst_21 : f32 to vector<1x512xf32>
    %46 = arith.cmpf oge, %35, %45 : vector<1x512xf32>
    %47 = arith.andi %44, %46 : vector<1x512xi1>
    %cst_22 = arith.constant 1.600000e+01 : f32
    %48 = vector.broadcast %cst_22 : f32 to vector<1x512xf32>
    %49 = arith.cmpf ole, %35, %48 : vector<1x512xf32>
    %50 = arith.andi %47, %49 : vector<1x512xi1>
    %cst_23 = arith.constant 0.000000e+00 : f32
    %51 = vector.shape_cast %50 : vector<1x512xi1> to vector<1x512xi1>
    %52 = vector.broadcast %51 : vector<1x512xi1> to vector<32x512xi1>
    %53 = vector.broadcast %cst_23 : f32 to vector<32x512xf32>
    %54 = arith.select %52, %27, %53 : vector<32x512xi1>, vector<32x512xf32>
    %cst_24 = arith.constant dense<0.000000e+00> : vector<40x512xf32>
    %55 = tpu.matmul %15, %54, %cst_24 {dimension_numbers = #tpu.dot_dimension_numbers<[1], [0], [0], [1], [0, 0, 1, 1], [], []>} : vector<40x32xf32>, vector<32x512xf32>, vector<40x512xf32> -> vector<40x512xf32>
    %56 = vector.extract_strided_slice %55 {offsets = [0, 0], sizes = [4, 384], strides = [1, 1]} : vector<40x512xf32> to vector<4x384xf32>
    %57 = vector.extract_strided_slice %55 {offsets = [4, 1], sizes = [4, 384], strides = [1, 1]} : vector<40x512xf32> to vector<4x384xf32>
    %58 = arith.addf %56, %57 : vector<4x384xf32>
    %59 = vector.extract_strided_slice %55 {offsets = [8, 2], sizes = [4, 384], strides = [1, 1]} : vector<40x512xf32> to vector<4x384xf32>
    %60 = arith.addf %58, %59 : vector<4x384xf32>
    %61 = vector.extract_strided_slice %55 {offsets = [12, 20], sizes = [4, 384], strides = [1, 1]} : vector<40x512xf32> to vector<4x384xf32>
    %62 = arith.addf %60, %61 : vector<4x384xf32>
    %63 = vector.extract_strided_slice %55 {offsets = [16, 21], sizes = [4, 384], strides = [1, 1]} : vector<40x512xf32> to vector<4x384xf32>
    %64 = arith.addf %62, %63 : vector<4x384xf32>
    %65 = vector.extract_strided_slice %55 {offsets = [20, 22], sizes = [4, 384], strides = [1, 1]} : vector<40x512xf32> to vector<4x384xf32>
    %66 = arith.addf %64, %65 : vector<4x384xf32>
    %67 = vector.extract_strided_slice %55 {offsets = [24, 40], sizes = [4, 384], strides = [1, 1]} : vector<40x512xf32> to vector<4x384xf32>
    %68 = arith.addf %66, %67 : vector<4x384xf32>
    %69 = vector.extract_strided_slice %55 {offsets = [28, 41], sizes = [4, 384], strides = [1, 1]} : vector<40x512xf32> to vector<4x384xf32>
    %70 = arith.addf %68, %69 : vector<4x384xf32>
    %71 = vector.extract_strided_slice %55 {offsets = [32, 42], sizes = [4, 384], strides = [1, 1]} : vector<40x512xf32> to vector<4x384xf32>
    %72 = arith.addf %70, %71 : vector<4x384xf32>
    %c0_25 = arith.constant 0 : index
    %c0_26 = arith.constant 0 : index
    %73 = vector.load %arg10[%c0_25, %c0_26] : memref<4x1xf32, #tpu.memory_space<vmem>>, vector<4x1xf32>
    %74 = vector.broadcast %73 : vector<4x1xf32> to vector<4x384xf32>
    %75 = arith.mulf %72, %74 : vector<4x384xf32>
    %c0_27 = arith.constant 0 : index
    %c0_28 = arith.constant 0 : index
    %c0_29 = arith.constant 0 : index
    %76 = vector.load %arg4[%c0_27, %c0_28, %c0_29] : memref<1x4x384xf32, #tpu.memory_space<vmem>>, vector<1x4x384xf32>
    %77 = vector.shape_cast %76 : vector<1x4x384xf32> to vector<4x384xf32>
    %78 = arith.addf %75, %77 : vector<4x384xf32>
    %79 = vector.extract_strided_slice %78 {offsets = [0, 0], sizes = [2, 384], strides = [1, 1]} : vector<4x384xf32> to vector<2x384xf32>
    %80 = vector.extract_strided_slice %78 {offsets = [2, 0], sizes = [2, 384], strides = [1, 1]} : vector<4x384xf32> to vector<2x384xf32>
    %cst_30 = arith.constant 2.000000e+00 : f32
    %81 = vector.broadcast %cst_30 : f32 to vector<2x384xf32>
    %82 = arith.addf %79, %81 : vector<2x384xf32>
    %83 = arith.negf %82 : vector<2x384xf32>
    %84 = math.exp %83 : vector<2x384xf32>
    %cst_31 = arith.constant 1.000000e+00 : f32
    %85 = vector.broadcast %cst_31 : f32 to vector<2x384xf32>
    %86 = arith.addf %85, %84 : vector<2x384xf32>
    %87 = arith.divf %85, %86 : vector<2x384xf32>
    %c0_32 = arith.constant 0 : index
    %c0_33 = arith.constant 0 : index
    %c0_34 = arith.constant 0 : index
    %c0_35 = arith.constant 0 : index
    %88 = vector.load %arg3[%c0_32, %c0_33, %c0_34, %c0_35] : memref<1x1x2x384xf32, #tpu.memory_space<vmem>>, vector<1x1x2x384xf32>
    %89 = vector.shape_cast %88 : vector<1x1x2x384xf32> to vector<2x384xf32>
    %90 = arith.addf %89, %80 : vector<2x384xf32>
    %91 = arith.mulf %90, %87 : vector<2x384xf32>
    %c0_36 = arith.constant 0 : index
    %c0_37 = arith.constant 0 : index
    %c0_38 = arith.constant 0 : index
    %c0_39 = arith.constant 0 : index
    %92 = vector.load %arg11[%c0_36, %c0_37, %c0_38, %c0_39] : memref<1x1x2x384xf32, #tpu.memory_space<vmem>>, vector<1x1x2x384xf32>
    %93 = vector.shape_cast %92 : vector<1x1x2x384xf32> to vector<2x384xf32>
    %94 = vector.shape_cast %91 : vector<2x384xf32> to vector<1x1x2x384xf32>
    tpu.vector_store %arg11[%c0_36, %c0_37, %c0_38, %c0_39], %94 {strides = array<i32>} : memref<1x1x2x384xf32, #tpu.memory_space<vmem>>, vector<1x1x2x384xf32>,
    return
  }
  func.func @transform_0(%arg0: i32, %arg1: i32) -> (i32, i32, i32, i32) {
    %c0_i32 = arith.constant 0 : i32
    %c0_i32_0 = arith.constant 0 : i32
    %c0_i32_1 = arith.constant 0 : i32
    return %arg0, %arg1, %c0_i32, %c0_i32_0 : i32, i32, i32, i32
  }
  func.func @transform_1(%arg0: i32, %arg1: i32) -> (i32, i32, i32, i32) {
    %c0_i32 = arith.constant 0 : i32
    %c0_i32_0 = arith.constant 0 : i32
    %c0_i32_1 = arith.constant 0 : i32
    return %arg0, %arg1, %c0_i32, %c0_i32_0 : i32, i32, i32, i32
  }
  func.func @transform_2(%arg0: i32, %arg1: i32) -> (i32, i32, i32) {
    %c0_i32 = arith.constant 0 : i32
    %c0_i32_0 = arith.constant 0 : i32
    %c0_i32_1 = arith.constant 0 : i32
    return %arg1, %c0_i32, %c0_i32_0 : i32, i32, i32
  }
  func.func @transform_3(%arg0: i32, %arg1: i32) -> (i32, i32) {
    %c0_i32 = arith.constant 0 : i32
    %c0_i32_0 = arith.constant 0 : i32
    %c0_i32_1 = arith.constant 0 : i32
    return %c0_i32, %c0_i32_0 : i32, i32
  }
  func.func @transform_4(%arg0: i32, %arg1: i32) -> (i32, i32) {
    %c0_i32 = arith.constant 0 : i32
    %c0_i32_0 = arith.constant 0 : i32
    %c0_i32_1 = arith.constant 0 : i32
    return %c0_i32, %c0_i32_0 : i32, i32
  }
  func.func @transform_5(%arg0: i32, %arg1: i32) -> (i32, i32) {
    %c0_i32 = arith.constant 0 : i32
    %c0_i32_0 = arith.constant 0 : i32
    %c0_i32_1 = arith.constant 0 : i32
    return %c0_i32, %c0_i32_0 : i32, i32
  }
  func.func @transform_6(%arg0: i32, %arg1: i32) -> (i32, i32) {
    %c0_i32 = arith.constant 0 : i32
    %c0_i32_0 = arith.constant 0 : i32
    %c0_i32_1 = arith.constant 0 : i32
    return %c0_i32, %c0_i32_0 : i32, i32
  }
  func.func @transform_7(%arg0: i32, %arg1: i32) -> (i32, i32) {
    %c0_i32 = arith.constant 0 : i32
    %c0_i32_0 = arith.constant 0 : i32
    %c0_i32_1 = arith.constant 0 : i32
    return %c0_i32, %c0_i32_0 : i32, i32
  }
  func.func @transform_8(%arg0: i32, %arg1: i32) -> (i32, i32) {
    %c0_i32 = arith.constant 0 : i32
    %c0_i32_0 = arith.constant 0 : i32
    %c0_i32_1 = arith.constant 0 : i32
    return %c0_i32, %c0_i32_0 : i32, i32
  }
  func.func @transform_9(%arg0: i32, %arg1: i32) -> (i32, i32, i32, i32) {
    %c0_i32 = arith.constant 0 : i32
    %c0_i32_0 = arith.constant 0 : i32
    %c0_i32_1 = arith.constant 0 : i32
    return %arg0, %arg1, %c0_i32, %c0_i32_0 : i32, i32, i32, i32
  }
}

</mosaic_0001>

<llo_original>
// kernel: affine_coupling_forward.1
$region0: #{affine_coupling_forward.1}
  #allocation0 [shape = 'u32[]', space=smem, size = 0x4, offset = 0x4, fixed_abs, tag = 'smem constant byte address 0x4 - core index']
  #allocation1 [shape = 'u32[144,128]{1,0:T(1,128)}', space=vmem, size = 0x12000, scoped, tag = 'internal scratch']
  %s0 = inlined_call_operand.vmem [shape: f32[2,1,2,640], index: 0, kind: input, shape index: {}]
  %s1 = inlined_call_operand.vmem [shape: f32[2,1,2,384], index: 1, kind: input, shape index: {}]
  %s2 = inlined_call_operand.vmem [shape: f32[1,4,384], index: 2, kind: input, shape index: {}]
  %s3 = inlined_call_operand.vmem [shape: f32[32,24], index: 3, kind: input, shape index: {}]
  %s4 = inlined_call_operand.vmem [shape: f32[32,1], index: 4, kind: input, shape index: {}]
  %s5 = inlined_call_operand.vmem [shape: f32[32,32], index: 5, kind: input, shape index: {}]
  %s6 = inlined_call_operand.vmem [shape: f32[32,1], index: 6, kind: input, shape index: {}]
  %s7 = inlined_call_operand.vmem [shape: f32[40,32], index: 7, kind: input, shape index: {}]
  %s8 = inlined_call_operand.vmem [shape: f32[4,1], index: 8, kind: input, shape index: {}]
  %s9 = inlined_call_operand.vmem [shape: f32[2,1,2,384], index: 9, kind: output, shape index: {}]
  %s10 = sld [smem:[#allocation0]]
  $region69: #{affine_coupling_forward.1} parent=0
    _
  %s12 = ssub.s32 1, %s10
  %s13 = scalar_select 0, %s12, %s10
  loop: start=0, step=1, limit=4
  $region2: #{affine_coupling_forward.1} parent=0 // loop_pre_header
    _
  $region3: #{affine_coupling_forward.1} parent=0 // loop_header
    %s15 = sphi 0, %s19
    %p16 = scmp.ge.s32.totalorder %s15, 4
    %s22 = sphi 0, %s34
    %s23 = sphi 0, %s30
    %s24 = sphi 0, %s22
    %s25 = sphi 0, %s23
    %s26 = sphi 0, %s24
    %s27 = sphi 0, %s25
    %s39 = sphi 0, %s41
    %s42 = sphi 0, %s39
    %s43 = sphi 0, %s42
    %s59 = sphi 0, %s43
    %s67 = sphi 0, %s69
    %s70 = sphi 0, %s67
    %s71 = sphi 0, %s70
    %s87 = sphi 0, %s71
    %s93 = sphi 0, %s95
    %s96 = sphi 0, %s93
    %s97 = sphi 0, %s96
    %s113 = sphi 0, %s97
    %s117 = sphi 0, %s117
    %s119 = sphi 0, %s117
    %s120 = sphi 0, %s119
    %s134 = sphi 0, %s120
    %s138 = sphi 0, %s138
    %s140 = sphi 0, %s138
    %s141 = sphi 0, %s140
    %s155 = sphi 0, %s141
    %s159 = sphi 0, %s159
    %s161 = sphi 0, %s159
    %s162 = sphi 0, %s161
    %s176 = sphi 0, %s162
    %s180 = sphi 0, %s180
    %s182 = sphi 0, %s180
    %s183 = sphi 0, %s182
    %s197 = sphi 0, %s183
    %s201 = sphi 0, %s201
    %s203 = sphi 0, %s201
    %s204 = sphi 0, %s203
    %s218 = sphi 0, %s204
    %s222 = sphi 0, %s222
    %s224 = sphi 0, %s222
    %s225 = sphi 0, %s224
    %s239 = sphi 0, %s225
    %s247 = sphi 0, %s249
    %s250 = sphi 0, %s247
    %s251 = sphi 0, %s250
    %s267 = sphi 0, %s251
  $region4: #{affine_coupling_forward.1} parent=0 // loop_header_branch
    %18 = sbr.rel (%p16) target = $region8
  $region5: #{affine_coupling_forward.1} parent=0 // loop_body
    %s20 = ssub.s32 %s15, 1
    %s21 = ssub.s32 %s15, 2
    %s28 = sadd.s32 1, %s23
    %p29 = scmp.ge.s32.totalorder %s28, 1
    %s30 = scalar_select %p29, 0, %s28
    %s31 = sadd.s32 1, %s22
    %s32 = scalar_select %p29, %s31, %s22
    %p33 = scmp.ge.s32.totalorder %s32, 2
    %s34 = scalar_select %p33, 0, %s32
    %s35 = ssub.s32 %s22, %s34
    %s36 = ssub.s32 %s23, %s30
    %s37 = sor.u32 %s35, %s36
    %p38 = scmp.eq.s32.totalorder %s37, 0
    %s40 = sadd.s32 %s39, 1
    %s41 = scalar_select %p38, %s39, %s40
    %p44 = pneg %p38
    %p45 = scmp.eq.s32.totalorder %s15, 1
    %p46 = por %p44, %p45
    %p47 = scmp.ne.s32.totalorder %s39, %s42
    %p48 = scmp.eq.s32.totalorder %s15, 0
    %p49 = por %p47, %p48
    %p50 = scmp.ne.s32.totalorder %s39, %s42
    %p51 = scmp.eq.s32.totalorder %s20, 1
    %p52 = por %p50, %p51
    %p53 = scmp.ne.s32.totalorder %s42, %s43
    %p54 = scmp.eq.s32.totalorder %s20, 0
    %p55 = por %p53, %p54
    %p56 = scmp.ne.s32.totalorder %s42, %s43
    %p57 = scmp.eq.s32.totalorder %s21, 1
    %p58 = por %p56, %p57
    %p60 = scmp.ne.s32.totalorder %s43, %s59
    %p61 = scmp.eq.s32.totalorder %s21, 0
    %p62 = por %p60, %p61
    %s63 = ssub.s32 %s22, %s34
    %s64 = ssub.s32 %s23, %s30
    %s65 = sor.u32 %s63, %s64
    %p66 = scmp.eq.s32.totalorder %s65, 0
    %s68 = sadd.s32 %s67, 1
    %s69 = scalar_select %p66, %s67, %s68
    %p72 = pneg %p66
    %p73 = scmp.eq.s32.totalorder %s15, 1
    %p74 = por %p72, %p73
    %p75 = scmp.ne.s32.totalorder %s67, %s70
    %p76 = scmp.eq.s32.totalorder %s15, 0
    %p77 = por %p75, %p76
    %p78 = scmp.ne.s32.totalorder %s67, %s70
    %p79 = scmp.eq.s32.totalorder %s20, 1
    %p80 = por %p78, %p79
    %p81 = scmp.ne.s32.totalorder %s70, %s71
    %p82 = scmp.eq.s32.totalorder %s20, 0
    %p83 = por %p81, %p82
    %p84 = scmp.ne.s32.totalorder %s70, %s71
    %p85 = scmp.eq.s32.totalorder %s21, 1
    %p86 = por %p84, %p85
    %p88 = scmp.ne.s32.totalorder %s71, %s87
    %p89 = scmp.eq.s32.totalorder %s21, 0
    %p90 = por %p88, %p89
    %s91 = ssub.s32 %s23, %s30
    %p92 = scmp.eq.s32.totalorder %s91, 0
    %s94 = sadd.s32 %s93, 1
    %s95 = scalar_select %p92, %s93, %s94
    %p98 = pneg %p92
    %p99 = scmp.eq.s32.totalorder %s15, 1
    %p100 = por %p98, %p99
    %p101 = scmp.ne.s32.totalorder %s93, %s96
    %p102 = scmp.eq.s32.totalorder %s15, 0
    %p103 = por %p101, %p102
    %p104 = scmp.ne.s32.totalorder %s93, %s96
    %p105 = scmp.eq.s32.totalorder %s20, 1
    %p106 = por %p104, %p105
    %p107 = scmp.ne.s32.totalorder %s96, %s97
    %p108 = scmp.eq.s32.totalorder %s20, 0
    %p109 = por %p107, %p108
    %p110 = scmp.ne.s32.totalorder %s96, %s97
    %p111 = scmp.eq.s32.totalorder %s21, 1
    %p112 = por %p110, %p111
    %p114 = scmp.ne.s32.totalorder %s97, %s113
    %p115 = scmp.eq.s32.totalorder %s21, 0
    %p116 = por %p114, %p115
    %s118 = sadd.s32 %s117, 1
    %p121 = scmp.eq.s32.totalorder %s15, 1
    %p122 = scmp.ne.s32.totalorder %s117, %s119
    %p123 = scmp.eq.s32.totalorder %s15, 0
    %p124 = por %p122, %p123
    %p125 = scmp.ne.s32.totalorder %s117, %s119
    %p126 = scmp.eq.s32.totalorder %s20, 1
    %p127 = por %p125, %p126
    %p128 = scmp.ne.s32.totalorder %s119, %s120
    %p129 = scmp.eq.s32.totalorder %s20, 0
    %p130 = por %p128, %p129
    %p131 = scmp.ne.s32.totalorder %s119, %s120
    %p132 = scmp.eq.s32.totalorder %s21, 1
    %p133 = por %p131, %p132
    %p135 = scmp.ne.s32.totalorder %s120, %s134
    %p136 = scmp.eq.s32.totalorder %s21, 0
    %p137 = por %p135, %p136
    %s139 = sadd.s32 %s138, 1
    %p142 = scmp.eq.s32.totalorder %s15, 1
    %p143 = scmp.ne.s32.totalorder %s138, %s140
    %p144 = scmp.eq.s32.totalorder %s15, 0
    %p145 = por %p143, %p144
    %p146 = scmp.ne.s32.totalorder %s138, %s140
    %p147 = scmp.eq.s32.totalorder %s20, 1
    %p148 = por %p146, %p147
    %p149 = scmp.ne.s32.totalorder %s140, %s141
    %p150 = scmp.eq.s32.totalorder %s20, 0
    %p151 = por %p149, %p150
    %p152 = scmp.ne.s32.totalorder %s140, %s141
    %p153 = scmp.eq.s32.totalorder %s21, 1
    %p154 = por %p152, %p153
    %p156 = scmp.ne.s32.totalorder %s141, %s155
    %p157 = scmp.eq.s32.totalorder %s21, 0
    %p158 = por %p156, %p157
    %s160 = sadd.s32 %s159, 1
    %p163 = scmp.eq.s32.totalorder %s15, 1
    %p164 = scmp.ne.s32.totalorder %s159, %s161
    %p165 = scmp.eq.s32.totalorder %s15, 0
    %p166 = por %p164, %p165
    %p167 = scmp.ne.s32.totalorder %s159, %s161
    %p168 = scmp.eq.s32.totalorder %s20, 1
    %p169 = por %p167, %p168
    %p170 = scmp.ne.s32.totalorder %s161, %s162
    %p171 = scmp.eq.s32.totalorder %s20, 0
    %p172 = por %p170, %p171
    %p173 = scmp.ne.s32.totalorder %s161, %s162
    %p174 = scmp.eq.s32.totalorder %s21, 1
    %p175 = por %p173, %p174
    %p177 = scmp.ne.s32.totalorder %s162, %s176
    %p178 = scmp.eq.s32.totalorder %s21, 0
    %p179 = por %p177, %p178
    %s181 = sadd.s32 %s180, 1
    %p184 = scmp.eq.s32.totalorder %s15, 1
    %p185 = scmp.ne.s32.totalorder %s180, %s182
    %p186 = scmp.eq.s32.totalorder %s15, 0
    %p187 = por %p185, %p186
    %p188 = scmp.ne.s32.totalorder %s180, %s182
    %p189 = scmp.eq.s32.totalorder %s20, 1
    %p190 = por %p188, %p189
    %p191 = scmp.ne.s32.totalorder %s182, %s183
    %p192 = scmp.eq.s32.totalorder %s20, 0
    %p193 = por %p191, %p192
    %p194 = scmp.ne.s32.totalorder %s182, %s183
    %p195 = scmp.eq.s32.totalorder %s21, 1
    %p196 = por %p194, %p195
    %p198 = scmp.ne.s32.totalorder %s183, %s197
    %p199 = scmp.eq.s32.totalorder %s21, 0
    %p200 = por %p198, %p199
    %s202 = sadd.s32 %s201, 1
    %p205 = scmp.eq.s32.totalorder %s15, 1
    %p206 = scmp.ne.s32.totalorder %s201, %s203
    %p207 = scmp.eq.s32.totalorder %s15, 0
    %p208 = por %p206, %p207
    %p209 = scmp.ne.s32.totalorder %s201, %s203
    %p210 = scmp.eq.s32.totalorder %s20, 1
    %p211 = por %p209, %p210
    %p212 = scmp.ne.s32.totalorder %s203, %s204
    %p213 = scmp.eq.s32.totalorder %s20, 0
    %p214 = por %p212, %p213
    %p215 = scmp.ne.s32.totalorder %s203, %s204
    %p216 = scmp.eq.s32.totalorder %s21, 1
    %p217 = por %p215, %p216
    %p219 = scmp.ne.s32.totalorder %s204, %s218
    %p220 = scmp.eq.s32.totalorder %s21, 0
    %p221 = por %p219, %p220
    %s223 = sadd.s32 %s222, 1
    %p226 = scmp.eq.s32.totalorder %s15, 1
    %p227 = scmp.ne.s32.totalorder %s222, %s224
    %p228 = scmp.eq.s32.totalorder %s15, 0
    %p229 = por %p227, %p228
    %p230 = scmp.ne.s32.totalorder %s222, %s224
    %p231 = scmp.eq.s32.totalorder %s20, 1
    %p232 = por %p230, %p231
    %p233 = scmp.ne.s32.totalorder %s224, %s225
    %p234 = scmp.eq.s32.totalorder %s20, 0
    %p235 = por %p233, %p234
    %p236 = scmp.ne.s32.totalorder %s224, %s225
    %p237 = scmp.eq.s32.totalorder %s21, 1
    %p238 = por %p236, %p237
    %p240 = scmp.ne.s32.totalorder %s225, %s239
    %p241 = scmp.eq.s32.totalorder %s21, 0
    %p242 = por %p240, %p241
    %s243 = ssub.s32 %s22, %s34
    %s244 = ssub.s32 %s23, %s30
    %s245 = sor.u32 %s243, %s244
    %p246 = scmp.eq.s32.totalorder %s245, 0
    %s248 = sadd.s32 %s247, 1
    %s249 = scalar_select %p246, %s247, %s248
    %p252 = pneg %p246
    %p253 = scmp.eq.s32.totalorder %s15, 1
    %p254 = por %p252, %p253
    %p255 = scmp.ne.s32.totalorder %s247, %s250
    %p256 = scmp.eq.s32.totalorder %s15, 0
    %p257 = por %p255, %p256
    %p258 = scmp.ne.s32.totalorder %s247, %s250
    %p259 = scmp.eq.s32.totalorder %s20, 1
    %p260 = por %p258, %p259
    %p261 = scmp.ne.s32.totalorder %s250, %s251
    %p262 = scmp.eq.s32.totalorder %s20, 0
    %p263 = por %p261, %p262
    %p264 = scmp.ne.s32.totalorder %s250, %s251
    %p265 = scmp.eq.s32.totalorder %s21, 1
    %p266 = por %p264, %p265
    %p268 = scmp.ne.s32.totalorder %s251, %s267
    %p269 = scmp.eq.s32.totalorder %s21, 0
    %p270 = por %p268, %p269
    %p271 = scmp.le.s32.totalorder 1, %s15
    %p272 = scmp.lt.s32.totalorder %s15, 3
    %p273 = pnand %p271, %p272
    %p274 = pneg %p273
    // Predicated region
    $region9: #{affine_coupling_forward.1} parent=5 // pred_check
      _
    $region10: #{affine_coupling_forward.1} parent=5 // pred_check_branch
      %276 = sbr.rel (%p273) target = $region12
    $region11: #{affine_coupling_forward.1} parent=5 // pred_region
      %s277 = ssub.s32 %s15, 1
      // Predicated region
      $region13: #{affine_coupling_forward.1} parent=11 // pred_check
        %p278 = pneg %p109
      $region14: #{affine_coupling_forward.1} parent=11 // pred_check_branch
        %280 = sbr.rel (%p278) target = $region16
      $region15: #{affine_coupling_forward.1} parent=11 // pred_region
        %p281 = scmp.lt.s32.totalorder %s25, 0
        %s282 = scalar_select %p281, %s25, 0
        %s283 = smul.addr %s282, 3
        %s284 = smul.addr %s283, 4
        %s285 = scalar_lea.vmem %s2, %s284
      $region16: #{affine_coupling_forward.1} parent=11 // pred_fallthru
        _
      // Predicated region
      $region17: #{affine_coupling_forward.1} parent=11 // pred_check
        %p286 = pneg %p130
      $region18: #{affine_coupling_forward.1} parent=11 // pred_check_branch
        %288 = sbr.rel (%p286) target = $region20
      $region19: #{affine_coupling_forward.1} parent=11 // pred_region
        _
      $region20: #{affine_coupling_forward.1} parent=11 // pred_fallthru
        _
      // Predicated region
      $region21: #{affine_coupling_forward.1} parent=11 // pred_check
        %p289 = pneg %p151
      $region22: #{affine_coupling_forward.1} parent=11 // pred_check_branch
        %291 = sbr.rel (%p289) target = $region24
      $region23: #{affine_coupling_forward.1} parent=11 // pred_region
        _
      $region24: #{affine_coupling_forward.1} parent=11 // pred_fallthru
        _
      // Predicated region
      $region25: #{affine_coupling_forward.1} parent=11 // pred_check
        %p292 = pneg %p172
      $region26: #{affine_coupling_forward.1} parent=11 // pred_check_branch
        %294 = sbr.rel (%p292) target = $region28
      $region27: #{affine_coupling_forward.1} parent=11 // pred_region
        _
      $region28: #{affine_coupling_forward.1} parent=11 // pred_fallthru
        _
      // Predicated region
      $region29: #{affine_coupling_forward.1} parent=11 // pred_check
        %p295 = pneg %p193
      $region30: #{affine_coupling_forward.1} parent=11 // pred_check_branch
        %297 = sbr.rel (%p295) target = $region32
      $region31: #{affine_coupling_forward.1} parent=11 // pred_region
        _
      $region32: #{affine_coupling_forward.1} parent=11 // pred_fallthru
        _
      // Predicated region
      $region33: #{affine_coupling_forward.1} parent=11 // pred_check
        %p298 = pneg %p214
      $region34: #{affine_coupling_forward.1} parent=11 // pred_check_branch
        %300 = sbr.rel (%p298) target = $region36
      $region35: #{affine_coupling_forward.1} parent=11 // pred_region
        _
      $region36: #{affine_coupling_forward.1} parent=11 // pred_fallthru
        _
      // Predicated region
      $region37: #{affine_coupling_forward.1} parent=11 // pred_check
        %p301 = pneg %p235
      $region38: #{affine_coupling_forward.1} parent=11 // pred_check_branch
        %303 = sbr.rel (%p301) target = $region40
      $region39: #{affine_coupling_forward.1} parent=11 // pred_region
        _
      $region40: #{affine_coupling_forward.1} parent=11 // pred_fallthru
        _
    $region12: #{affine_coupling_forward.1} parent=5 // pred_fallthru
      _
    %p304 = scmp.lt.s32.totalorder %s15, 2
    // Predicated region
    $region41: #{affine_coupling_forward.1} parent=5 // pred_check
      %p305 = pneg %p304
    $region42: #{affine_coupling_forward.1} parent=5 // pred_check_branch
      %307 = sbr.rel (%p305) target = $region44
    $region43: #{affine_coupling_forward.1} parent=5 // pred_region
      // Predicated region
      $region45: #{affine_coupling_forward.1} parent=43 // pred_check
        %p308 = pneg %p49
      $region46: #{affine_coupling_forward.1} parent=43 // pred_check_branch
        %310 = sbr.rel (%p308) target = $region48
      $region47: #{affine_coupling_forward.1} parent=43 // pred_region
        %p311 = scmp.lt.s32.totalorder %s22, 1
        %s312 = scalar_select %p311, %s22, 1
        %p313 = scmp.lt.s32.totalorder %s23, 0
        %s314 = scalar_select %p313, %s23, 0
        %s315 = smul.addr %s314, 5
        %s316 = smul.addr %s312, 5
        %s317 = sadd.s32 %s315, %s316
        %s318 = smul.addr %s317, 2
        %s319 = scalar_lea.vmem %s0, %s318
      $region48: #{affine_coupling_forward.1} parent=43 // pred_fallthru
        _
      // Predicated region
      $region49: #{affine_coupling_forward.1} parent=43 // pred_check
        %p320 = pneg %p77
      $region50: #{affine_coupling_forward.1} parent=43 // pred_check_branch
        %322 = sbr.rel (%p320) target = $region52
      $region51: #{affine_coupling_forward.1} parent=43 // pred_region
        %p323 = scmp.lt.s32.totalorder %s22, 1
        %s324 = scalar_select %p323, %s22, 1
        %p325 = scmp.lt.s32.totalorder %s23, 0
        %s326 = scalar_select %p325, %s23, 0
        %s327 = smul.addr %s326, 3
        %s328 = smul.addr %s324, 3
        %s329 = sadd.s32 %s327, %s328
        %s330 = smul.addr %s329, 2
        %s331 = scalar_lea.vmem %s1, %s330
      $region52: #{affine_coupling_forward.1} parent=43 // pred_fallthru
        _
    $region44: #{affine_coupling_forward.1} parent=5 // pred_fallthru
      _
    %p332 = scmp.le.s32.totalorder 1, %s15
    %p333 = scmp.lt.s32.totalorder %s15, 3
    %p334 = pnand %p332, %p333
    %p335 = pneg %p334
    // Predicated region
    $region53: #{affine_coupling_forward.1} parent=5 // pred_check
      _
    $region54: #{affine_coupling_forward.1} parent=5 // pred_check_branch
      %337 = sbr.rel (%p334) target = $region56
    $region55: #{affine_coupling_forward.1} parent=5 // pred_region
      %s338 = ssub.s32 %s15, 1
      %p339 = scmp.lt.s32.totalorder %s24, 1
      %s340 = scalar_select %p339, %s24, 1
      %p341 = scmp.lt.s32.totalorder %s25, 0
      %s342 = scalar_select %p341, %s25, 0
      %s343 = smul.addr %s342, 5
      %s344 = smul.addr %s340, 5
      %s345 = sadd.s32 %s343, %s344
      %s346 = smul.addr %s345, 2
      %s347 = scalar_lea.vmem %s0, %s346
      %p348 = pneg %p55
      %p349 = pneg %p52
      %p350 = scmp.lt.s32.totalorder %s24, 1
      %s351 = scalar_select %p350, %s24, 1
      %p352 = scmp.lt.s32.totalorder %s25, 0
      %s353 = scalar_select %p352, %s25, 0
      %s354 = smul.addr %s353, 3
      %s355 = smul.addr %s351, 3
      %s356 = sadd.s32 %s354, %s355
      %s357 = smul.addr %s356, 2
      %s358 = scalar_lea.vmem %s1, %s357
      %p359 = pneg %p83
      %p360 = pneg %p80
      %p361 = scmp.lt.s32.totalorder %s25, 0
      %s362 = scalar_select %p361, %s25, 0
      %s363 = smul.addr %s362, 3
      %s364 = smul.addr %s363, 4
      %s365 = scalar_lea.vmem %s2, %s364
      %p366 = pneg %p109
      %p367 = pneg %p106
      %p368 = pneg %p130
      %p369 = pneg %p127
      %p370 = pneg %p151
      %p371 = pneg %p148
      %p372 = pneg %p172
      %p373 = pneg %p169
      %p374 = pneg %p193
      %p375 = pneg %p190
      %p376 = pneg %p214
      %p377 = pneg %p211
      %p378 = pneg %p235
      %p379 = pneg %p232
      %p380 = pneg %p263
      %p381 = pneg %p260
      %p382 = scmp.lt.s32.totalorder %s24, 1
      %s383 = scalar_select %p382, %s24, 1
      %p384 = scmp.lt.s32.totalorder %s25, 0
      %s385 = scalar_select %p384, %s25, 0
      %s386 = smul.addr %s385, 3
      %s387 = smul.addr %s383, 3
      %s388 = sadd.s32 %s386, %s387
      %s389 = smul.addr %s388, 2
      %s390 = scalar_lea.vmem %s9, %s389
      %p391 = scmp.lt.s32.totalorder %s24, 1
      %s392 = scalar_select %p391, %s24, 1
      %p393 = scmp.lt.s32.totalorder %s25, 0
      %s394 = scalar_select %p393, %s25, 0
      %s395 = smul.addr %s394, 5
      %s396 = smul.addr %s392, 5
      %s397 = sadd.s32 %s395, %s396
      %s398 = smul.addr %s397, 2
      %s399 = scalar_lea.vmem %s0, %s398
      %p400 = scmp.lt.s32.totalorder %s24, 1
      %s401 = scalar_select %p400, %s24, 1
      %p402 = scmp.lt.s32.totalorder %s25, 0
      %s403 = scalar_select %p402, %s25, 0
      %s404 = smul.addr %s403, 3
      %s405 = smul.addr %s401, 3
      %s406 = sadd.s32 %s404, %s405
      %s407 = smul.addr %s406, 2
      %s408 = scalar_lea.vmem %s1, %s407
      %p409 = scmp.lt.s32.totalorder %s25, 0
      %s410 = scalar_select %p409, %s25, 0
      %s411 = smul.addr %s410, 3
      %s412 = smul.addr %s411, 4
      %s413 = scalar_lea.vmem %s2, %s412
      %p414 = scmp.lt.s32.totalorder %s24, 1
      %s415 = scalar_select %p414, %s24, 1
      %p416 = scmp.lt.s32.totalorder %s25, 0
      %s417 = scalar_select %p416, %s25, 0
      %s418 = smul.addr %s417, 3
      %s419 = smul.addr %s415, 3
      %s420 = sadd.s32 %s418, %s419
      %s421 = smul.addr %s420, 2
      %s422 = scalar_lea.vmem %s9, %s421
      %v423 = vld [vmem:[%s399] sm:$0xff]
      %v424 = vld [vmem:[%s399 + $0x8] sm:$0x3]
      %v426 = vcombine.high %v423, %v423
      %v428 = vunpack.c.l.s4 1983009808
      %v429 = vunpack.c.0.s8 %v428
      %v430 = vlaneseq
      %v431 = vshrl.u32 %v430, 7
      %v432 = vsub.s32 %v429, %v431
      %v433 = vrot.slane %v423, %v432
      %v435 = vunpack.c.l.s4 1983009808
      %v436 = vunpack.c.0.s8 %v435
      %v437 = vlaneseq
      %v438 = vshrl.u32 %v437, 7
      %v439 = vsub.s32 %v436, %v438
      %v440 = vrot.slane %v426, %v439
      %v441 = vcombine.high %v433, %v433
      %v442 = vcombine.high %v440, %v440
      %v448 = vcombine.low %v423, %v423
      %v450 = vunpack.c.l.s4 1983009808
      %v451 = vunpack.c.0.s8 %v450
      %v452 = vlaneseq
      %v453 = vshrl.u32 %v452, 7
      %v454 = vsub.s32 %v451, %v453
      %v455 = vrot.slane %v448, %v454
      %v456 = vcombine.high %v455, %v455
      %v457 = vcombine.low %v424, %v424
      %v459 = vunpack.c.l.s4 1983009808
      %v460 = vunpack.c.0.s8 %v459
      %v461 = vlaneseq
      %v462 = vshrl.u32 %v461, 7
      %v463 = vsub.s32 %v460, %v462
      %v464 = vrot.slane %v457, %v463
      %v466 = vunpack.c.l.s4 1983009808
      %v467 = vunpack.c.0.s8 %v466
      %v468 = vlaneseq
      %v469 = vshrl.u32 %v468, 7
      %v470 = vsub.s32 %v467, %v469
      %v471 = vrot.slane %v424, %v470
      %472 = vrot.lane.b32.xlu0 %v455, 127
      %v473 = vpop.permute.xlu0 %472
      %474 = vrot.lane.b32.xlu0 %v456, 127
      %v475 = vpop.permute.xlu0 %474
      %476 = vrot.lane.b32.xlu0 %v433, 127
      %v477 = vpop.permute.xlu0 %476
      %478 = vrot.lane.b32.xlu0 %v441, 127
      %v479 = vpop.permute.xlu0 %478
      %480 = vrot.lane.b32.xlu0 %v464, 127
      %v481 = vpop.permute.xlu0 %480
      %vm482 = vcmask 1039360
      %v483 = vsel %vm482, %v473, %v475
      %v484 = vsel %vm482, %v475, %v477
      %v485 = vsel %vm482, %v477, %v479
      %v486 = vsel %vm482, %v479, %v481
      %v491 = vcombine.low %v433, %v433
      %v492 = vcombine.low %v440, %v440
      %v493 = vcombine.low %v471, %v471
      %494 = vrot.lane.b32.xlu0 %v491, 126
      %v495 = vpop.permute.xlu0 %494
      %496 = vrot.lane.b32.xlu0 %v433, 126
      %v497 = vpop.permute.xlu0 %496
      %498 = vrot.lane.b32.xlu0 %v492, 126
      %v499 = vpop.permute.xlu0 %498
      %500 = vrot.lane.b32.xlu0 %v440, 126
      %v501 = vpop.permute.xlu0 %500
      %502 = vrot.lane.b32.xlu0 %v493, 126
      %v503 = vpop.permute.xlu0 %502
      %vm504 = vcmask 1031168
      %v505 = vsel %vm504, %v495, %v497
      %v506 = vsel %vm504, %v497, %v499
      %v507 = vsel %vm504, %v499, %v501
      %v508 = vsel %vm504, %v501, %v503
      %v513 = vcombine.low %v455, %v455
      %v514 = vcombine.low %v464, %v464
      %515 = vrot.lane.b32.xlu0 %v513, 108
      %v516 = vpop.permute.xlu0 %515
      %517 = vrot.lane.b32.xlu0 %v455, 108
      %v518 = vpop.permute.xlu0 %517
      %519 = vrot.lane.b32.xlu0 %v491, 108
      %v520 = vpop.permute.xlu0 %519
      %521 = vrot.lane.b32.xlu0 %v433, 108
      %v522 = vpop.permute.xlu0 %521
      %523 = vrot.lane.b32.xlu0 %v514, 108
      %v524 = vpop.permute.xlu0 %523
      %vm525 = vcmask 883712
      %v526 = vsel %vm525, %v516, %v518
      %v527 = vsel %vm525, %v518, %v520
      %v528 = vsel %vm525, %v520, %v522
      %v529 = vsel %vm525, %v522, %v524
      %534 = vrot.lane.b32.xlu0 %v433, 107
      %v535 = vpop.permute.xlu0 %534
      %536 = vrot.lane.b32.xlu0 %v441, 107
      %v537 = vpop.permute.xlu0 %536
      %538 = vrot.lane.b32.xlu0 %v440, 107
      %v539 = vpop.permute.xlu0 %538
      %540 = vrot.lane.b32.xlu0 %v442, 107
      %v541 = vpop.permute.xlu0 %540
      %542 = vrot.lane.b32.xlu0 %v471, 107
      %v543 = vpop.permute.xlu0 %542
      %vm544 = vcmask 875520
      %v545 = vsel %vm544, %v535, %v537
      %v546 = vsel %vm544, %v537, %v539
      %v547 = vsel %vm544, %v539, %v541
      %v548 = vsel %vm544, %v541, %v543
      %553 = vrot.lane.b32.xlu0 %v455, 106
      %v554 = vpop.permute.xlu0 %553
      %555 = vrot.lane.b32.xlu0 %v456, 106
      %v556 = vpop.permute.xlu0 %555
      %557 = vrot.lane.b32.xlu0 %v433, 106
      %v558 = vpop.permute.xlu0 %557
      %559 = vrot.lane.b32.xlu0 %v441, 106
      %v560 = vpop.permute.xlu0 %559
      %561 = vrot.lane.b32.xlu0 %v464, 106
      %v562 = vpop.permute.xlu0 %561
      %vm563 = vcmask 867328
      %v564 = vsel %vm563, %v554, %v556
      %v565 = vsel %vm563, %v556, %v558
      %v566 = vsel %vm563, %v558, %v560
      %v567 = vsel %vm563, %v560, %v562
      %572 = vrot.lane.b32.xlu0 %v491, 88
      %v573 = vpop.permute.xlu0 %572
      %574 = vrot.lane.b32.xlu0 %v433, 88
      %v575 = vpop.permute.xlu0 %574
      %576 = vrot.lane.b32.xlu0 %v492, 88
      %v577 = vpop.permute.xlu0 %576
      %578 = vrot.lane.b32.xlu0 %v440, 88
      %v579 = vpop.permute.xlu0 %578
      %580 = vrot.lane.b32.xlu0 %v493, 88
      %v581 = vpop.permute.xlu0 %580
      %vm582 = vcmask 719872
      %v583 = vsel %vm582, %v573, %v575
      %v584 = vsel %vm582, %v575, %v577
      %v585 = vsel %vm582, %v577, %v579
      %v586 = vsel %vm582, %v579, %v581
      %591 = vrot.lane.b32.xlu0 %v513, 87
      %v592 = vpop.permute.xlu0 %591
      %593 = vrot.lane.b32.xlu0 %v455, 87
      %v594 = vpop.permute.xlu0 %593
      %595 = vrot.lane.b32.xlu0 %v491, 87
      %v596 = vpop.permute.xlu0 %595
      %597 = vrot.lane.b32.xlu0 %v433, 87
      %v598 = vpop.permute.xlu0 %597
      %599 = vrot.lane.b32.xlu0 %v514, 87
      %v600 = vpop.permute.xlu0 %599
      %vm601 = vcmask 711680
      %v602 = vsel %vm601, %v592, %v594
      %v603 = vsel %vm601, %v594, %v596
      %v604 = vsel %vm601, %v596, %v598
      %v605 = vsel %vm601, %v598, %v600
      %610 = vrot.lane.b32.xlu0 %v433, 86
      %v611 = vpop.permute.xlu0 %610
      %612 = vrot.lane.b32.xlu0 %v441, 86
      %v613 = vpop.permute.xlu0 %612
      %614 = vrot.lane.b32.xlu0 %v440, 86
      %v615 = vpop.permute.xlu0 %614
      %616 = vrot.lane.b32.xlu0 %v442, 86
      %v617 = vpop.permute.xlu0 %616
      %618 = vrot.lane.b32.xlu0 %v471, 86
      %v619 = vpop.permute.xlu0 %618
      %vm620 = vcmask 703488
      %v621 = vsel %vm620, %v611, %v613
      %v622 = vsel %vm620, %v613, %v615
      %v623 = vsel %vm620, %v615, %v617
      %v624 = vsel %vm620, %v617, %v619
      %vm629 = vcmask 1041408
      %v630 = vsel %vm629, %v433, %v483
      %v631 = vsel %vm629, %v441, %v484
      %v632 = vsel %vm629, %v440, %v485
      %v633 = vsel %vm629, %v442, %v486
      %vm634 = vcmask 1043456
      %v635 = vsel %vm634, %v630, %v505
      %v636 = vsel %vm634, %v631, %v506
      %v637 = vsel %vm634, %v632, %v507
      %v638 = vsel %vm634, %v633, %v508
      %vm639 = vcmask 1045504
      %v640 = vsel %vm639, %v635, %v526
      %v641 = vsel %vm639, %v636, %v527
      %v642 = vsel %vm639, %v637, %v528
      %v643 = vsel %vm639, %v638, %v529
      %v644 = vsel %vm629, %v545, %v564
      %v645 = vsel %vm629, %v546, %v565
      %v646 = vsel %vm629, %v547, %v566
      %v647 = vsel %vm629, %v548, %v567
      %v648 = vsel %vm634, %v644, %v583
      %v649 = vsel %vm634, %v645, %v584
      %v650 = vsel %vm634, %v646, %v585
      %v651 = vsel %vm634, %v647, %v586
      %v652 = vsel %vm639, %v648, %v602
      %v653 = vsel %vm639, %v649, %v603
      %v654 = vsel %vm639, %v650, %v604
      %v655 = vsel %vm639, %v651, %v605
      %v656 = vsel %vm629, %v621, 0.0
      %v657 = vsel %vm629, %v622, 0.0
      %v658 = vsel %vm629, %v623, 0.0
      %v659 = vsel %vm629, %v624, 0.0
      %v660 = vld [vmem:[%s3] sm:$0xff]
      %v661 = vld [vmem:[%s3 + $0x8] sm:$0xff]
      %v662 = vld [vmem:[%s3 + $0x10] sm:$0xff]
      %v663 = vld [vmem:[%s3 + $0x18] sm:$0xff]
      %v664 = vld [vmem:[%s5] sm:$0xff]
      %v665 = vld [vmem:[%s5 + $0x8] sm:$0xff]
      %v666 = vld [vmem:[%s5 + $0x10] sm:$0xff]
      %v667 = vld [vmem:[%s5 + $0x18] sm:$0xff]
      %v668 = vld [vmem:[%s7] sm:$0xff]
      %v669 = vld [vmem:[%s7 + $0x8] sm:$0xff]
      %v670 = vld [vmem:[%s7 + $0x10] sm:$0xff]
      %v671 = vld [vmem:[%s7 + $0x18] sm:$0xff]
      %v672 = vld [vmem:[%s7 + $0x20] sm:$0xff]
      %v673 = vld [vmem:[%s4] sm:$0xff]
      %v674 = vld [vmem:[%s4 + $0x8] sm:$0xff]
      %v675 = vld [vmem:[%s4 + $0x10] sm:$0xff]
      %v676 = vld [vmem:[%s4 + $0x18] sm:$0xff]
      %678 = vset.pattern.permute.xlu0 0
      %679 = vperm.xlu0 %678, %v673
      %v680 = vpop.permute.xlu0 %679
      %683 = vset.pattern.permute.xlu0 0
      %684 = vperm.xlu0 %683, %v674
      %v685 = vpop.permute.xlu0 %684
      %688 = vset.pattern.permute.xlu0 0
      %689 = vperm.xlu0 %688, %v675
      %v690 = vpop.permute.xlu0 %689
      %693 = vset.pattern.permute.xlu0 0
      %694 = vperm.xlu0 %693, %v676
      %v695 = vpop.permute.xlu0 %694
      %vm697 = vcmask 195584
      %v699 = vsel %vm697, %v660, 0
      %v702 = vsel %vm697, %v661, 0
      %v705 = vsel %vm697, %v662, 0
      %v708 = vsel %vm697, %v663, 0
      %710 = vmatprep.subr.mxu0 0.0
      %711 = vmatpush1.msra.mxu0 0.0
      %712 = vmatprep.subr.mxu0 0.0
      %713 = vmatpush1.msra.mxu0 0.0
      %714 = vmatprep.subr.mxu0 0.0
      %715 = vmatpush1.msra.mxu0 0.0
      %716 = vmatprep.subr.mxu0 0.0
      %717 = vmatpush1.msra.mxu0 0.0
      %718 = vmatprep.subr.mxu0 0.0
      %719 = vmatpush1.msra.mxu0 0.0
      %720 = vmatprep.subr.mxu0 0.0
      %721 = vmatpush1.msra.mxu0 0.0
      %722 = vmatprep.subr.mxu0 0.0
      %723 = vmatpush1.msra.mxu0 0.0
      %724 = vmatprep.subr.mxu0 0.0
      %725 = vmatpush1.msra.mxu0 0.0
      %726 = vmatprep.subr.mxu0 0.0
      %727 = vmatpush1.msra.mxu0 0.0
      %728 = vmatprep.subr.mxu0 0.0
      %729 = vmatpush1.msra.mxu0 0.0
      %730 = vmatprep.subr.mxu0 0.0
      %731 = vmatpush1.msra.mxu0 0.0
      %732 = vmatprep.subr.mxu0 0.0
      %733 = vmatpush1.msra.mxu0 0.0
      %734 = vmatprep.subr.mxu0 0.0
      %735 = vmatpush1.msra.mxu0 0.0
      %736 = vmatprep.subr.mxu0 %v657
      %737 = vmatpush1.msra.mxu0 %v656
      %738 = vmatprep.subr.mxu0 %v653
      %739 = vmatpush1.msra.mxu0 %v652
      %740 = vmatprep.subr.mxu0 %v641
      %741 = vmatpush1.msra.mxu0 %v640
      %742 = vmatprep.subr.mxu0 0.0
      %743 = vmatpush2.msra.mxu0 0.0
      %744 = vmatprep.subr.mxu0 0.0
      %745 = vmatpush2.msra.mxu0 0.0
      %746 = vmatprep.subr.mxu0 0.0
      %747 = vmatpush2.msra.mxu0 0.0
      %748 = vmatprep.subr.mxu0 0.0
      %749 = vmatpush2.msra.mxu0 0.0
      %750 = vmatprep.subr.mxu0 0.0
      %751 = vmatpush2.msra.mxu0 0.0
      %752 = vmatprep.subr.mxu0 0.0
      %753 = vmatpush2.msra.mxu0 0.0
      %754 = vmatprep.subr.mxu0 0.0
      %755 = vmatpush2.msra.mxu0 0.0
      %756 = vmatprep.subr.mxu0 0.0
      %757 = vmatpush2.msra.mxu0 0.0
      %758 = vmatprep.subr.mxu0 0.0
      %759 = vmatpush2.msra.mxu0 0.0
      %760 = vmatprep.subr.mxu0 0.0
      %761 = vmatpush2.msra.mxu0 0.0
      %762 = vmatprep.subr.mxu0 0.0
      %763 = vmatpush2.msra.mxu0 0.0
      %764 = vmatprep.subr.mxu0 0.0
      %765 = vmatpush2.msra.mxu0 0.0
      %766 = vmatprep.subr.mxu0 0.0
      %767 = vmatpush2.msra.mxu0 0.0
      %768 = vmatprep.subr.mxu0 0.0
      %769 = vmatpush2.msra.mxu0 0.0
      %770 = vmatprep.subr.mxu0 0.0
      %771 = vmatpush2.msra.mxu0 0.0
      %772 = vmatprep.subr.mxu0 0.0
      %773 = vmatpush2.msra.mxu0 0.0
      %774 = vmatprep.mubr.f32.mxu0 0.0
      %775 = vmatmul.mubr.f32.gmra.mxu0 %v699
      %v776 = vpop.f32.mrf.mxu0
      %v777 = vadd.f32 %v680, %v776
      %v778 = vpop.f32.mrf.mxu0
      %v779 = vadd.f32 %v680, %v778
      %780 = vmatprep.mubr.f32.mxu0 0.0
      %781 = vmatmul.mubr.f32.gmra.mxu0 %v702
      %v782 = vpop.f32.mrf.mxu0
      %v783 = vadd.f32 %v685, %v782
      %v784 = vpop.f32.mrf.mxu0
      %v785 = vadd.f32 %v685, %v784
      %786 = vmatprep.mubr.f32.mxu0 0.0
      %787 = vmatmul.mubr.f32.gmra.mxu0 %v705
      %v788 = vpop.f32.mrf.mxu0
      %v789 = vadd.f32 %v690, %v788
      %v790 = vpop.f32.mrf.mxu0
      %v791 = vadd.f32 %v690, %v790
      %792 = vmatprep.mubr.f32.mxu0 0.0
      %793 = vmatmul.mubr.f32.gmra.mxu0 %v708
      %v794 = vpop.f32.mrf.mxu0
      %v795 = vadd.f32 %v695, %v794
      %v796 = vpop.f32.mrf.mxu0
      %v797 = vadd.f32 %v695, %v796
      %798 = vdwg.mxu0
      %799 = vmatprep.subr.mxu0 0.0
      %800 = vmatpush1.msra.mxu0 0.0
      %801 = vmatprep.subr.mxu0 0.0
      %802 = vmatpush1.msra.mxu0 0.0
      %803 = vmatprep.subr.mxu0 0.0
      %804 = vmatpush1.msra.mxu0 0.0
      %805 = vmatprep.subr.mxu0 0.0
      %806 = vmatpush1.msra.mxu0 0.0
      %807 = vmatprep.subr.mxu0 0.0
      %808 = vmatpush1.msra.mxu0 0.0
      %809 = vmatprep.subr.mxu0 0.0
      %810 = vmatpush1.msra.mxu0 0.0
      %811 = vmatprep.subr.mxu0 0.0
      %812 = vmatpush1.msra.mxu0 0.0
      %813 = vmatprep.subr.mxu0 0.0
      %814 = vmatpush1.msra.mxu0 0.0
      %815 = vmatprep.subr.mxu0 0.0
      %816 = vmatpush1.msra.mxu0 0.0
      %817 = vmatprep.subr.mxu0 0.0
      %818 = vmatpush1.msra.mxu0 0.0
      %819 = vmatprep.subr.mxu0 0.0
      %820 = vmatpush1.msra.mxu0 0.0
      %821 = vmatprep.subr.mxu0 0.0
      %822 = vmatpush1.msra.mxu0 0.0
      %823 = vmatprep.subr.mxu0 0.0
      %824 = vmatpush1.msra.mxu0 0.0
      %825 = vmatprep.subr.mxu0 %v659
      %826 = vmatpush1.msra.mxu0 %v658
      %827 = vmatprep.subr.mxu0 %v655
      %828 = vmatpush1.msra.mxu0 %v654
      %829 = vmatprep.subr.mxu0 %v643
      %830 = vmatpush1.msra.mxu0 %v642
      %831 = vmatprep.subr.mxu0 0.0
      %832 = vmatpush2.msra.mxu0 0.0
      %833 = vmatprep.subr.mxu0 0.0
      %834 = vmatpush2.msra.mxu0 0.0
      %835 = vmatprep.subr.mxu0 0.0
      %836 = vmatpush2.msra.mxu0 0.0
      %837 = vmatprep.subr.mxu0 0.0
      %838 = vmatpush2.msra.mxu0 0.0
      %839 = vmatprep.subr.mxu0 0.0
      %840 = vmatpush2.msra.mxu0 0.0
      %841 = vmatprep.subr.mxu0 0.0
      %842 = vmatpush2.msra.mxu0 0.0
      %843 = vmatprep.subr.mxu0 0.0
      %844 = vmatpush2.msra.mxu0 0.0
      %845 = vmatprep.subr.mxu0 0.0
      %846 = vmatpush2.msra.mxu0 0.0
      %847 = vmatprep.subr.mxu0 0.0
      %848 = vmatpush2.msra.mxu0 0.0
      %849 = vmatprep.subr.mxu0 0.0
      %850 = vmatpush2.msra.mxu0 0.0
      %851 = vmatprep.subr.mxu0 0.0
      %852 = vmatpush2.msra.mxu0 0.0
      %853 = vmatprep.subr.mxu0 0.0
      %854 = vmatpush2.msra.mxu0 0.0
      %855 = vmatprep.subr.mxu0 0.0
      %856 = vmatpush2.msra.mxu0 0.0
      %857 = vmatprep.subr.mxu0 0.0
      %858 = vmatpush2.msra.mxu0 0.0
      %859 = vmatprep.subr.mxu0 0.0
      %860 = vmatpush2.msra.mxu0 0.0
      %861 = vmatprep.subr.mxu0 0.0
      %862 = vmatpush2.msra.mxu0 0.0
      %863 = vmatprep.mubr.f32.mxu0 0.0
      %864 = vmatmul.mubr.f32.gmra.mxu0 %v699
      %v865 = vpop.f32.mrf.mxu0
      %v866 = vadd.f32 %v680, %v865
      %v867 = vpop.f32.mrf.mxu0
      %v868 = vadd.f32 %v680, %v867
      %869 = vmatprep.mubr.f32.mxu0 0.0
      %870 = vmatmul.mubr.f32.gmra.mxu0 %v702
      %v871 = vpop.f32.mrf.mxu0
      %v872 = vadd.f32 %v685, %v871
      %v873 = vpop.f32.mrf.mxu0
      %v874 = vadd.f32 %v685, %v873
      %875 = vmatprep.mubr.f32.mxu0 0.0
      %876 = vmatmul.mubr.f32.gmra.mxu0 %v705
      %v877 = vpop.f32.mrf.mxu0
      %v878 = vadd.f32 %v690, %v877
      %v879 = vpop.f32.mrf.mxu0
      %v880 = vadd.f32 %v690, %v879
      %881 = vmatprep.mubr.f32.mxu0 0.0
      %882 = vmatmul.mubr.f32.gmra.mxu0 %v708
      %v883 = vpop.f32.mrf.mxu0
      %v884 = vadd.f32 %v695, %v883
      %v885 = vpop.f32.mrf.mxu0
      %v886 = vadd.f32 %v695, %v885
      %887 = vdwg.mxu0
      %v888 = vmax.f32 %v777, 0.0
      %v889 = vmax.f32 %v779, 0.0
      %v890 = vmax.f32 %v866, 0.0
      %v891 = vmax.f32 %v868, 0.0
      %v892 = vmax.f32 %v783, 0.0
      %v893 = vmax.f32 %v785, 0.0
      %v894 = vmax.f32 %v872, 0.0
      %v895 = vmax.f32 %v874, 0.0
      %v896 = vmax.f32 %v789, 0.0
      %v897 = vmax.f32 %v791, 0.0
      %v898 = vmax.f32 %v878, 0.0
      %v899 = vmax.f32 %v880, 0.0
      %v900 = vmax.f32 %v795, 0.0
      %v901 = vmax.f32 %v797, 0.0
      %v902 = vmax.f32 %v884, 0.0
      %v903 = vmax.f32 %v886, 0.0
      %v904 = vld [vmem:[%s6] sm:$0xff]
      %v905 = vld [vmem:[%s6 + $0x8] sm:$0xff]
      %v906 = vld [vmem:[%s6 + $0x10] sm:$0xff]
      %v907 = vld [vmem:[%s6 + $0x18] sm:$0xff]
      %909 = vset.pattern.permute.xlu0 0
      %910 = vperm.xlu0 %909, %v904
      %v911 = vpop.permute.xlu0 %910
      %914 = vset.pattern.permute.xlu0 0
      %915 = vperm.xlu0 %914, %v905
      %v916 = vpop.permute.xlu0 %915
      %919 = vset.pattern.permute.xlu0 0
      %920 = vperm.xlu0 %919, %v906
      %v921 = vpop.permute.xlu0 %920
      %924 = vset.pattern.permute.xlu0 0
      %925 = vperm.xlu0 %924, %v907
      %v926 = vpop.permute.xlu0 %925
      %vm928 = vcmask 261120
      %v930 = vsel %vm928, %v664, 0
      %v933 = vsel %vm928, %v665, 0
      %v936 = vsel %vm928, %v666, 0
      %v939 = vsel %vm928, %v667, 0
      %941 = vmatprep.subr.mxu0 0.0
      %942 = vmatpush1.msra.mxu0 0.0
      %943 = vmatprep.subr.mxu0 0.0
      %944 = vmatpush1.msra.mxu0 0.0
      %945 = vmatprep.subr.mxu0 0.0
      %946 = vmatpush1.msra.mxu0 0.0
      %947 = vmatprep.subr.mxu0 0.0
      %948 = vmatpush1.msra.mxu0 0.0
      %949 = vmatprep.subr.mxu0 0.0
      %950 = vmatpush1.msra.mxu0 0.0
      %951 = vmatprep.subr.mxu0 0.0
      %952 = vmatpush1.msra.mxu0 0.0
      %953 = vmatprep.subr.mxu0 0.0
      %954 = vmatpush1.msra.mxu0 0.0
      %955 = vmatprep.subr.mxu0 0.0
      %956 = vmatpush1.msra.mxu0 0.0
      %957 = vmatprep.subr.mxu0 0.0
      %958 = vmatpush1.msra.mxu0 0.0
      %959 = vmatprep.subr.mxu0 0.0
      %960 = vmatpush1.msra.mxu0 0.0
      %961 = vmatprep.subr.mxu0 0.0
      %962 = vmatpush1.msra.mxu0 0.0
      %963 = vmatprep.subr.mxu0 0.0
      %964 = vmatpush1.msra.mxu0 0.0
      %965 = vmatprep.subr.mxu0 %v901
      %966 = vmatpush1.msra.mxu0 %v900
      %967 = vmatprep.subr.mxu0 %v897
      %968 = vmatpush1.msra.mxu0 %v896
      %969 = vmatprep.subr.mxu0 %v893
      %970 = vmatpush1.msra.mxu0 %v892
      %971 = vmatprep.subr.mxu0 %v889
      %972 = vmatpush1.msra.mxu0 %v888
      %973 = vmatprep.subr.mxu0 0.0
      %974 = vmatpush2.msra.mxu0 0.0
      %975 = vmatprep.subr.mxu0 0.0
      %976 = vmatpush2.msra.mxu0 0.0
      %977 = vmatprep.subr.mxu0 0.0
      %978 = vmatpush2.msra.mxu0 0.0
      %979 = vmatprep.subr.mxu0 0.0
      %980 = vmatpush2.msra.mxu0 0.0
      %981 = vmatprep.subr.mxu0 0.0
      %982 = vmatpush2.msra.mxu0 0.0
      %983 = vmatprep.subr.mxu0 0.0
      %984 = vmatpush2.msra.mxu0 0.0
      %985 = vmatprep.subr.mxu0 0.0
      %986 = vmatpush2.msra.mxu0 0.0
      %987 = vmatprep.subr.mxu0 0.0
      %988 = vmatpush2.msra.mxu0 0.0
      %989 = vmatprep.subr.mxu0 0.0
      %990 = vmatpush2.msra.mxu0 0.0
      %991 = vmatprep.subr.mxu0 0.0
      %992 = vmatpush2.msra.mxu0 0.0
      %993 = vmatprep.subr.mxu0 0.0
      %994 = vmatpush2.msra.mxu0 0.0
      %995 = vmatprep.subr.mxu0 0.0
      %996 = vmatpush2.msra.mxu0 0.0
      %997 = vmatprep.subr.mxu0 0.0
      %998 = vmatpush2.msra.mxu0 0.0
      %999 = vmatprep.subr.mxu0 0.0
      %1000 = vmatpush2.msra.mxu0 0.0
      %1001 = vmatprep.subr.mxu0 0.0
      %1002 = vmatpush2.msra.mxu0 0.0
      %1003 = vmatprep.subr.mxu0 0.0
      %1004 = vmatpush2.msra.mxu0 0.0
      %1005 = vmatprep.mubr.f32.mxu0 0.0
      %1006 = vmatmul.mubr.f32.gmra.mxu0 %v930
      %v1007 = vpop.f32.mrf.mxu0
      %v1008 = vadd.f32 %v911, %v1007
      %v1009 = vpop.f32.mrf.mxu0
      %v1010 = vadd.f32 %v911, %v1009
      %1011 = vmatprep.mubr.f32.mxu0 0.0
      %1012 = vmatmul.mubr.f32.gmra.mxu0 %v933
      %v1013 = vpop.f32.mrf.mxu0
      %v1014 = vadd.f32 %v916, %v1013
      %v1015 = vpop.f32.mrf.mxu0
      %v1016 = vadd.f32 %v916, %v1015
      %1017 = vmatprep.mubr.f32.mxu0 0.0
      %1018 = vmatmul.mubr.f32.gmra.mxu0 %v936
      %v1019 = vpop.f32.mrf.mxu0
      %v1020 = vadd.f32 %v921, %v1019
      %v1021 = vpop.f32.mrf.mxu0
      %v1022 = vadd.f32 %v921, %v1021
      %1023 = vmatprep.mubr.f32.mxu0 0.0
      %1024 = vmatmul.mubr.f32.gmra.mxu0 %v939
      %v1025 = vpop.f32.mrf.mxu0
      %v1026 = vadd.f32 %v926, %v1025
      %v1027 = vpop.f32.mrf.mxu0
      %v1028 = vadd.f32 %v926, %v1027
      %1029 = vdwg.mxu0
      %1030 = vmatprep.subr.mxu0 0.0
      %1031 = vmatpush1.msra.mxu0 0.0
      %1032 = vmatprep.subr.mxu0 0.0
      %1033 = vmatpush1.msra.mxu0 0.0
      %1034 = vmatprep.subr.mxu0 0.0
      %1035 = vmatpush1.msra.mxu0 0.0
      %1036 = vmatprep.subr.mxu0 0.0
      %1037 = vmatpush1.msra.mxu0 0.0
      %1038 = vmatprep.subr.mxu0 0.0
      %1039 = vmatpush1.msra.mxu0 0.0
      %1040 = vmatprep.subr.mxu0 0.0
      %1041 = vmatpush1.msra.mxu0 0.0
      %1042 = vmatprep.subr.mxu0 0.0
      %1043 = vmatpush1.msra.mxu0 0.0
      %1044 = vmatprep.subr.mxu0 0.0
      %1045 = vmatpush1.msra.mxu0 0.0
      %1046 = vmatprep.subr.mxu0 0.0
      %1047 = vmatpush1.msra.mxu0 0.0
      %1048 = vmatprep.subr.mxu0 0.0
      %1049 = vmatpush1.msra.mxu0 0.0
      %1050 = vmatprep.subr.mxu0 0.0
      %1051 = vmatpush1.msra.mxu0 0.0
      %1052 = vmatprep.subr.mxu0 0.0
      %1053 = vmatpush1.msra.mxu0 0.0
      %1054 = vmatprep.subr.mxu0 %v903
      %1055 = vmatpush1.msra.mxu0 %v902
      %1056 = vmatprep.subr.mxu0 %v899
      %1057 = vmatpush1.msra.mxu0 %v898
      %1058 = vmatprep.subr.mxu0 %v895
      %1059 = vmatpush1.msra.mxu0 %v894
      %1060 = vmatprep.subr.mxu0 %v891
      %1061 = vmatpush1.msra.mxu0 %v890
      %1062 = vmatprep.subr.mxu0 0.0
      %1063 = vmatpush2.msra.mxu0 0.0
      %1064 = vmatprep.subr.mxu0 0.0
      %1065 = vmatpush2.msra.mxu0 0.0
      %1066 = vmatprep.subr.mxu0 0.0
      %1067 = vmatpush2.msra.mxu0 0.0
      %1068 = vmatprep.subr.mxu0 0.0
      %1069 = vmatpush2.msra.mxu0 0.0
      %1070 = vmatprep.subr.mxu0 0.0
      %1071 = vmatpush2.msra.mxu0 0.0
      %1072 = vmatprep.subr.mxu0 0.0
      %1073 = vmatpush2.msra.mxu0 0.0
      %1074 = vmatprep.subr.mxu0 0.0
      %1075 = vmatpush2.msra.mxu0 0.0
      %1076 = vmatprep.subr.mxu0 0.0
      %1077 = vmatpush2.msra.mxu0 0.0
      %1078 = vmatprep.subr.mxu0 0.0
      %1079 = vmatpush2.msra.mxu0 0.0
      %1080 = vmatprep.subr.mxu0 0.0
      %1081 = vmatpush2.msra.mxu0 0.0
      %1082 = vmatprep.subr.mxu0 0.0
      %1083 = vmatpush2.msra.mxu0 0.0
      %1084 = vmatprep.subr.mxu0 0.0
      %1085 = vmatpush2.msra.mxu0 0.0
      %1086 = vmatprep.subr.mxu0 0.0
      %1087 = vmatpush2.msra.mxu0 0.0
      %1088 = vmatprep.subr.mxu0 0.0
      %1089 = vmatpush2.msra.mxu0 0.0
      %1090 = vmatprep.subr.mxu0 0.0
      %1091 = vmatpush2.msra.mxu0 0.0
      %1092 = vmatprep.subr.mxu0 0.0
      %1093 = vmatpush2.msra.mxu0 0.0
      %1094 = vmatprep.mubr.f32.mxu0 0.0
      %1095 = vmatmul.mubr.f32.gmra.mxu0 %v930
      %v1096 = vpop.f32.mrf.mxu0
      %v1097 = vadd.f32 %v911, %v1096
      %v1098 = vpop.f32.mrf.mxu0
      %v1099 = vadd.f32 %v911, %v1098
      %1100 = vmatprep.mubr.f32.mxu0 0.0
      %1101 = vmatmul.mubr.f32.gmra.mxu0 %v933
      %v1102 = vpop.f32.mrf.mxu0
      %v1103 = vadd.f32 %v916, %v1102
      %v1104 = vpop.f32.mrf.mxu0
      %v1105 = vadd.f32 %v916, %v1104
      %1106 = vmatprep.mubr.f32.mxu0 0.0
      %1107 = vmatmul.mubr.f32.gmra.mxu0 %v936
      %v1108 = vpop.f32.mrf.mxu0
      %v1109 = vadd.f32 %v921, %v1108
      %v1110 = vpop.f32.mrf.mxu0
      %v1111 = vadd.f32 %v921, %v1110
      %1112 = vmatprep.mubr.f32.mxu0 0.0
      %1113 = vmatmul.mubr.f32.gmra.mxu0 %v939
      %v1114 = vpop.f32.mrf.mxu0
      %v1115 = vadd.f32 %v926, %v1114
      %v1116 = vpop.f32.mrf.mxu0
      %v1117 = vadd.f32 %v926, %v1116
      %1118 = vdwg.mxu0
      %v1119 = vmax.f32 %v1008, 0.0
      %v1120 = vmax.f32 %v1010, 0.0
      %v1121 = vmax.f32 %v1097, 0.0
      %v1122 = vmax.f32 %v1099, 0.0
      %v1123 = vmax.f32 %v1014, 0.0
      %v1124 = vmax.f32 %v1016, 0.0
      %v1125 = vmax.f32 %v1103, 0.0
      %v1126 = vmax.f32 %v1105, 0.0
      %v1127 = vmax.f32 %v1020, 0.0
      %v1128 = vmax.f32 %v1022, 0.0
      %v1129 = vmax.f32 %v1109, 0.0
      %v1130 = vmax.f32 %v1111, 0.0
      %v1131 = vmax.f32 %v1026, 0.0
      %v1132 = vmax.f32 %v1028, 0.0
      %v1133 = vmax.f32 %v1115, 0.0
      %v1134 = vmax.f32 %v1117, 0.0
      %v1135 = vlaneseq
      %v1136 = vand.u32 %v1135, 127
      %v1137 = vadd.s32 %v1136, 128
      %v1138 = vadd.s32 %v1136, 256
      %v1139 = vadd.s32 %v1136, 384
      %v1140 = vcvt.s32.f32 %v1136
      %v1141 = vcvt.s32.f32 %v1137
      %v1142 = vcvt.s32.f32 %v1138
      %v1143 = vcvt.s32.f32 %v1139
      %v1144 = vmul.f32 %v1140, 0.05000005
      %v1145 = vmul.f32 %v1141, 0.05000005
      %v1146 = vmul.f32 %v1142, 0.05000005
      %v1147 = vmul.f32 %v1143, 0.05000005
      %v1148 = vfloor.f32 %v1144
      %v1149 = vfloor.f32 %v1145
      %v1150 = vfloor.f32 %v1146
      %v1151 = vfloor.f32 %v1147
      %v1152 = vmul.f32 %v1148, 20.0
      %v1153 = vmul.f32 %v1149, 20.0
      %v1154 = vmul.f32 %v1150, 20.0
      %v1155 = vmul.f32 %v1151, 20.0
      %v1156 = vsub.f32 %v1140, %v1152
      %v1157 = vsub.f32 %v1141, %v1153
      %v1158 = vsub.f32 %v1142, %v1154
      %v1159 = vsub.f32 %v1143, %v1155
      %s1160 = smul.u32 %s25, 16
      %s1161 = scvt.s32.f32 %s1160
      %v1162 = vstv %s1161
      %v1163 = vadd.f32 %v1148, %v1162
      %v1164 = vadd.f32 %v1149, %v1162
      %v1165 = vadd.f32 %v1150, %v1162
      %v1166 = vadd.f32 %v1151, %v1162
      %vm1167 = vcmp.ge.f32.partialorder %v1163, 1.0
      %vm1168 = vcmp.ge.f32.partialorder %v1164, 1.0
      %vm1169 = vcmp.ge.f32.partialorder %v1165, 1.0
      %vm1170 = vcmp.ge.f32.partialorder %v1166, 1.0
      %vm1171 = vcmp.le.f32.partialorder %v1163, 16.0
      %vm1172 = vcmp.le.f32.partialorder %v1164, 16.0
      %vm1173 = vcmp.le.f32.partialorder %v1165, 16.0
      %vm1174 = vcmp.le.f32.partialorder %v1166, 16.0
      %vm1175 = vmand %vm1167, %vm1171
      %vm1176 = vmand %vm1168, %vm1172
      %vm1177 = vmand %vm1169, %vm1173
      %vm1178 = vmand %vm1170, %vm1174
      %vm1179 = vcmp.ge.f32.partialorder %v1156, 1.0
      %vm1180 = vcmp.ge.f32.partialorder %v1157, 1.0
      %vm1181 = vcmp.ge.f32.partialorder %v1158, 1.0
      %vm1182 = vcmp.ge.f32.partialorder %v1159, 1.0
      %vm1183 = vmand %vm1175, %vm1179
      %vm1184 = vmand %vm1176, %vm1180
      %vm1185 = vmand %vm1177, %vm1181
      %vm1186 = vmand %vm1178, %vm1182
      %vm1187 = vcmp.le.f32.partialorder %v1156, 16.0
      %vm1188 = vcmp.le.f32.partialorder %v1157, 16.0
      %vm1189 = vcmp.le.f32.partialorder %v1158, 16.0
      %vm1190 = vcmp.le.f32.partialorder %v1159, 16.0
      %vm1191 = vmand %vm1183, %vm1187
      %vm1192 = vmand %vm1184, %vm1188
      %vm1193 = vmand %vm1185, %vm1189
      %vm1194 = vmand %vm1186, %vm1190
      %v1195 = vsel %vm1191, 1, 0
      %v1196 = vsel %vm1192, 1, 0
      %v1197 = vsel %vm1193, 1, 0
      %v1198 = vsel %vm1194, 1, 0
      %vm1199 = vcmp.eq.s32.totalorder %v1195, 1
      %vm1200 = vcmp.eq.s32.totalorder %v1196, 1
      %vm1201 = vcmp.eq.s32.totalorder %v1197, 1
      %vm1202 = vcmp.eq.s32.totalorder %v1198, 1
      %v1203 = vsel %vm1199, %v1119, 0.0
      %v1204 = vsel %vm1200, %v1120, 0.0
      %v1205 = vsel %vm1201, %v1121, 0.0
      %v1206 = vsel %vm1202, %v1122, 0.0
      %v1207 = vsel %vm1199, %v1123, 0.0
      %v1208 = vsel %vm1200, %v1124, 0.0
      %v1209 = vsel %vm1201, %v1125, 0.0
      %v1210 = vsel %vm1202, %v1126, 0.0
      %v1211 = vsel %vm1199, %v1127, 0.0
      %v1212 = vsel %vm1200, %v1128, 0.0
      %v1213 = vsel %vm1201, %v1129, 0.0
      %v1214 = vsel %vm1202, %v1130, 0.0
      %v1215 = vsel %vm1199, %v1131, 0.0
      %v1216 = vsel %vm1200, %v1132, 0.0
      %v1217 = vsel %vm1201, %v1133, 0.0
      %v1218 = vsel %vm1202, %v1134, 0.0
      %v1220 = vsel %vm928, %v668, 0
      %v1223 = vsel %vm928, %v669, 0
      %v1226 = vsel %vm928, %v670, 0
      %v1229 = vsel %vm928, %v671, 0
      %v1232 = vsel %vm928, %v672, 0
      %1234 = vmatprep.subr.mxu0 0.0
      %1235 = vmatpush1.msra.mxu0 0.0
      %1236 = vmatprep.subr.mxu0 0.0
      %1237 = vmatpush1.msra.mxu0 0.0
      %1238 = vmatprep.subr.mxu0 0.0
      %1239 = vmatpush1.msra.mxu0 0.0
      %1240 = vmatprep.subr.mxu0 0.0
      %1241 = vmatpush1.msra.mxu0 0.0
      %1242 = vmatprep.subr.mxu0 0.0
      %1243 = vmatpush1.msra.mxu0 0.0
      %1244 = vmatprep.subr.mxu0 0.0
      %1245 = vmatpush1.msra.mxu0 0.0
      %1246 = vmatprep.subr.mxu0 0.0
      %1247 = vmatpush1.msra.mxu0 0.0
      %1248 = vmatprep.subr.mxu0 0.0
      %1249 = vmatpush1.msra.mxu0 0.0
      %1250 = vmatprep.subr.mxu0 0.0
      %1251 = vmatpush1.msra.mxu0 0.0
      %1252 = vmatprep.subr.mxu0 0.0
      %1253 = vmatpush1.msra.mxu0 0.0
      %1254 = vmatprep.subr.mxu0 0.0
      %1255 = vmatpush1.msra.mxu0 0.0
      %1256 = vmatprep.subr.mxu0 0.0
      %1257 = vmatpush1.msra.mxu0 0.0
      %1258 = vmatprep.subr.mxu0 %v1216
      %1259 = vmatpush1.msra.mxu0 %v1215
      %1260 = vmatprep.subr.mxu0 %v1212
      %1261 = vmatpush1.msra.mxu0 %v1211
      %1262 = vmatprep.subr.mxu0 %v1208
      %1263 = vmatpush1.msra.mxu0 %v1207
      %1264 = vmatprep.subr.mxu0 %v1204
      %1265 = vmatpush1.msra.mxu0 %v1203
      %1266 = vmatprep.subr.mxu0 0.0
      %1267 = vmatpush2.msra.mxu0 0.0
      %1268 = vmatprep.subr.mxu0 0.0
      %1269 = vmatpush2.msra.mxu0 0.0
      %1270 = vmatprep.subr.mxu0 0.0
      %1271 = vmatpush2.msra.mxu0 0.0
      %1272 = vmatprep.subr.mxu0 0.0
      %1273 = vmatpush2.msra.mxu0 0.0
      %1274 = vmatprep.subr.mxu0 0.0
      %1275 = vmatpush2.msra.mxu0 0.0
      %1276 = vmatprep.subr.mxu0 0.0
      %1277 = vmatpush2.msra.mxu0 0.0
      %1278 = vmatprep.subr.mxu0 0.0
      %1279 = vmatpush2.msra.mxu0 0.0
      %1280 = vmatprep.subr.mxu0 0.0
      %1281 = vmatpush2.msra.mxu0 0.0
      %1282 = vmatprep.subr.mxu0 0.0
      %1283 = vmatpush2.msra.mxu0 0.0
      %1284 = vmatprep.subr.mxu0 0.0
      %1285 = vmatpush2.msra.mxu0 0.0
      %1286 = vmatprep.subr.mxu0 0.0
      %1287 = vmatpush2.msra.mxu0 0.0
      %1288 = vmatprep.subr.mxu0 0.0
      %1289 = vmatpush2.msra.mxu0 0.0
      %1290 = vmatprep.subr.mxu0 0.0
      %1291 = vmatpush2.msra.mxu0 0.0
      %1292 = vmatprep.subr.mxu0 0.0
      %1293 = vmatpush2.msra.mxu0 0.0
      %1294 = vmatprep.subr.mxu0 0.0
      %1295 = vmatpush2.msra.mxu0 0.0
      %1296 = vmatprep.subr.mxu0 0.0
      %1297 = vmatpush2.msra.mxu0 0.0
      %1298 = vmatprep.mubr.f32.mxu0 0.0
      %1299 = vmatmul.mubr.f32.gmra.mxu0 %v1220
      %v1300 = vpop.f32.mrf.mxu0
      %v1301 = vadd.f32 0.0, %v1300
      %v1302 = vpop.f32.mrf.mxu0
      %v1303 = vadd.f32 0.0, %v1302
      %1304 = vmatprep.mubr.f32.mxu0 0.0
      %1305 = vmatmul.mubr.f32.gmra.mxu0 %v1223
      %v1306 = vpop.f32.mrf.mxu0
      %v1307 = vadd.f32 0.0, %v1306
      %v1308 = vpop.f32.mrf.mxu0
      %v1309 = vadd.f32 0.0, %v1308
      %1310 = vmatprep.mubr.f32.mxu0 0.0
      %1311 = vmatmul.mubr.f32.gmra.mxu0 %v1226
      %v1312 = vpop.f32.mrf.mxu0
      %v1313 = vadd.f32 0.0, %v1312
      %v1314 = vpop.f32.mrf.mxu0
      %v1315 = vadd.f32 0.0, %v1314
      %1316 = vmatprep.mubr.f32.mxu0 0.0
      %1317 = vmatmul.mubr.f32.gmra.mxu0 %v1229
      %v1318 = vpop.f32.mrf.mxu0
      %v1319 = vadd.f32 0.0, %v1318
      %v1320 = vpop.f32.mrf.mxu0
      %v1321 = vadd.f32 0.0, %v1320
      %1322 = vmatprep.mubr.f32.mxu0 0.0
      %1323 = vmatmul.mubr.f32.gmra.mxu0 %v1232
      %v1324 = vpop.f32.mrf.mxu0
      %v1325 = vadd.f32 0.0, %v1324
      %v1326 = vpop.f32.mrf.mxu0
      %v1327 = vadd.f32 0.0, %v1326
      %1328 = vdwg.mxu0
      %1329 = vmatprep.subr.mxu0 0.0
      %1330 = vmatpush1.msra.mxu0 0.0
      %1331 = vmatprep.subr.mxu0 0.0
      %1332 = vmatpush1.msra.mxu0 0.0
      %1333 = vmatprep.subr.mxu0 0.0
      %1334 = vmatpush1.msra.mxu0 0.0
      %1335 = vmatprep.subr.mxu0 0.0
      %1336 = vmatpush1.msra.mxu0 0.0
      %1337 = vmatprep.subr.mxu0 0.0
      %1338 = vmatpush1.msra.mxu0 0.0
      %1339 = vmatprep.subr.mxu0 0.0
      %1340 = vmatpush1.msra.mxu0 0.0
      %1341 = vmatprep.subr.mxu0 0.0
      %1342 = vmatpush1.msra.mxu0 0.0
      %1343 = vmatprep.subr.mxu0 0.0
      %1344 = vmatpush1.msra.mxu0 0.0
      %1345 = vmatprep.subr.mxu0 0.0
      %1346 = vmatpush1.msra.mxu0 0.0
      %1347 = vmatprep.subr.mxu0 0.0
      %1348 = vmatpush1.msra.mxu0 0.0
      %1349 = vmatprep.subr.mxu0 0.0
      %1350 = vmatpush1.msra.mxu0 0.0
      %1351 = vmatprep.subr.mxu0 0.0
      %1352 = vmatpush1.msra.mxu0 0.0
      %1353 = vmatprep.subr.mxu0 %v1218
      %1354 = vmatpush1.msra.mxu0 %v1217
      %1355 = vmatprep.subr.mxu0 %v1214
      %1356 = vmatpush1.msra.mxu0 %v1213
      %1357 = vmatprep.subr.mxu0 %v1210
      %1358 = vmatpush1.msra.mxu0 %v1209
      %1359 = vmatprep.subr.mxu0 %v1206
      %1360 = vmatpush1.msra.mxu0 %v1205
      %1361 = vmatprep.subr.mxu0 0.0
      %1362 = vmatpush2.msra.mxu0 0.0
      %1363 = vmatprep.subr.mxu0 0.0
      %1364 = vmatpush2.msra.mxu0 0.0
      %1365 = vmatprep.subr.mxu0 0.0
      %1366 = vmatpush2.msra.mxu0 0.0
      %1367 = vmatprep.subr.mxu0 0.0
      %1368 = vmatpush2.msra.mxu0 0.0
      %1369 = vmatprep.subr.mxu0 0.0
      %1370 = vmatpush2.msra.mxu0 0.0
      %1371 = vmatprep.subr.mxu0 0.0
      %1372 = vmatpush2.msra.mxu0 0.0
      %1373 = vmatprep.subr.mxu0 0.0
      %1374 = vmatpush2.msra.mxu0 0.0
      %1375 = vmatprep.subr.mxu0 0.0
      %1376 = vmatpush2.msra.mxu0 0.0
      %1377 = vmatprep.subr.mxu0 0.0
      %1378 = vmatpush2.msra.mxu0 0.0
      %1379 = vmatprep.subr.mxu0 0.0
      %1380 = vmatpush2.msra.mxu0 0.0
      %1381 = vmatprep.subr.mxu0 0.0
      %1382 = vmatpush2.msra.mxu0 0.0
      %1383 = vmatprep.subr.mxu0 0.0
      %1384 = vmatpush2.msra.mxu0 0.0
      %1385 = vmatprep.subr.mxu0 0.0
      %1386 = vmatpush2.msra.mxu0 0.0
      %1387 = vmatprep.subr.mxu0 0.0
      %1388 = vmatpush2.msra.mxu0 0.0
      %1389 = vmatprep.subr.mxu0 0.0
      %1390 = vmatpush2.msra.mxu0 0.0
      %1391 = vmatprep.subr.mxu0 0.0
      %1392 = vmatpush2.msra.mxu0 0.0
      %1393 = vmatprep.mubr.f32.mxu0 0.0
      %1394 = vmatmul.mubr.f32.gmra.mxu0 %v1220
      %v1395 = vpop.f32.mrf.mxu0
      %v1396 = vadd.f32 0.0, %v1395
      %v1397 = vpop.f32.mrf.mxu0
      %v1398 = vadd.f32 0.0, %v1397
      %1399 = vmatprep.mubr.f32.mxu0 0.0
      %1400 = vmatmul.mubr.f32.gmra.mxu0 %v1223
      %v1401 = vpop.f32.mrf.mxu0
      %v1402 = vadd.f32 0.0, %v1401
      %v1403 = vpop.f32.mrf.mxu0
      %v1404 = vadd.f32 0.0, %v1403
      %1405 = vmatprep.mubr.f32.mxu0 0.0
      %1406 = vmatmul.mubr.f32.gmra.mxu0 %v1226
      %v1407 = vpop.f32.mrf.mxu0
      %v1408 = vadd.f32 0.0, %v1407
      %v1409 = vpop.f32.mrf.mxu0
      %v1410 = vadd.f32 0.0, %v1409
      %1411 = vmatprep.mubr.f32.mxu0 0.0
      %1412 = vmatmul.mubr.f32.gmra.mxu0 %v1229
      %v1413 = vpop.f32.mrf.mxu0
      %v1414 = vadd.f32 0.0, %v1413
      %v1415 = vpop.f32.mrf.mxu0
      %v1416 = vadd.f32 0.0, %v1415
      %1417 = vmatprep.mubr.f32.mxu0 0.0
      %1418 = vmatmul.mubr.f32.gmra.mxu0 %v1232
      %v1419 = vpop.f32.mrf.mxu0
      %v1420 = vadd.f32 0.0, %v1419
      %v1421 = vpop.f32.mrf.mxu0
      %v1422 = vadd.f32 0.0, %v1421
      %1423 = vdwg.mxu0
      %v1428 = vrot.slane %v1301, 4
      %v1429 = vrot.slane %v1303, 4
      %v1430 = vrot.slane %v1396, 4
      %v1431 = vrot.slane %v1398, 4
      %1432 = vrot.lane.b32.xlu0 %v1428, 127
      %v1433 = vpop.permute.xlu0 %1432
      %1434 = vrot.lane.b32.xlu0 %v1429, 127
      %v1435 = vpop.permute.xlu0 %1434
      %1436 = vrot.lane.b32.xlu0 %v1430, 127
      %v1437 = vpop.permute.xlu0 %1436
      %1438 = vrot.lane.b32.xlu0 %v1431, 127
      %v1439 = vpop.permute.xlu0 %1438
      %v1440 = vsel %vm482, %v1433, %v1435
      %v1441 = vsel %vm482, %v1435, %v1437
      %v1442 = vsel %vm482, %v1437, %v1439
      %v1446 = vadd.f32 %v1301, %v1440
      %v1447 = vadd.f32 %v1303, %v1441
      %v1448 = vadd.f32 %v1396, %v1442
      %1453 = vrot.lane.b32.xlu0 %v1307, 126
      %v1454 = vpop.permute.xlu0 %1453
      %1455 = vrot.lane.b32.xlu0 %v1309, 126
      %v1456 = vpop.permute.xlu0 %1455
      %1457 = vrot.lane.b32.xlu0 %v1402, 126
      %v1458 = vpop.permute.xlu0 %1457
      %1459 = vrot.lane.b32.xlu0 %v1404, 126
      %v1460 = vpop.permute.xlu0 %1459
      %v1461 = vsel %vm504, %v1454, %v1456
      %v1462 = vsel %vm504, %v1456, %v1458
      %v1463 = vsel %vm504, %v1458, %v1460
      %v1467 = vadd.f32 %v1446, %v1461
      %v1468 = vadd.f32 %v1447, %v1462
      %v1469 = vadd.f32 %v1448, %v1463
      %v1470 = vrot.slane %v1307, 4
      %v1471 = vrot.slane %v1309, 4
      %v1472 = vrot.slane %v1402, 4
      %v1473 = vrot.slane %v1404, 4
      %1474 = vrot.lane.b32.xlu0 %v1470, 108
      %v1475 = vpop.permute.xlu0 %1474
      %1476 = vrot.lane.b32.xlu0 %v1471, 108
      %v1477 = vpop.permute.xlu0 %1476
      %1478 = vrot.lane.b32.xlu0 %v1472, 108
      %v1479 = vpop.permute.xlu0 %1478
      %1480 = vrot.lane.b32.xlu0 %v1473, 108
      %v1481 = vpop.permute.xlu0 %1480
      %v1482 = vsel %vm525, %v1475, %v1477
      %v1483 = vsel %vm525, %v1477, %v1479
      %v1484 = vsel %vm525, %v1479, %v1481
      %v1488 = vadd.f32 %v1467, %v1482
      %v1489 = vadd.f32 %v1468, %v1483
      %v1490 = vadd.f32 %v1469, %v1484
      %1495 = vrot.lane.b32.xlu0 %v1313, 107
      %v1496 = vpop.permute.xlu0 %1495
      %1497 = vrot.lane.b32.xlu0 %v1315, 107
      %v1498 = vpop.permute.xlu0 %1497
      %1499 = vrot.lane.b32.xlu0 %v1408, 107
      %v1500 = vpop.permute.xlu0 %1499
      %1501 = vrot.lane.b32.xlu0 %v1410, 107
      %v1502 = vpop.permute.xlu0 %1501
      %v1503 = vsel %vm544, %v1496, %v1498
      %v1504 = vsel %vm544, %v1498, %v1500
      %v1505 = vsel %vm544, %v1500, %v1502
      %v1509 = vadd.f32 %v1488, %v1503
      %v1510 = vadd.f32 %v1489, %v1504
      %v1511 = vadd.f32 %v1490, %v1505
      %v1512 = vrot.slane %v1313, 4
      %v1513 = vrot.slane %v1315, 4
      %v1514 = vrot.slane %v1408, 4
      %v1515 = vrot.slane %v1410, 4
      %1516 = vrot.lane.b32.xlu0 %v1512, 106
      %v1517 = vpop.permute.xlu0 %1516
      %1518 = vrot.lane.b32.xlu0 %v1513, 106
      %v1519 = vpop.permute.xlu0 %1518
      %1520 = vrot.lane.b32.xlu0 %v1514, 106
      %v1521 = vpop.permute.xlu0 %1520
      %1522 = vrot.lane.b32.xlu0 %v1515, 106
      %v1523 = vpop.permute.xlu0 %1522
      %v1524 = vsel %vm563, %v1517, %v1519
      %v1525 = vsel %vm563, %v1519, %v1521
      %v1526 = vsel %vm563, %v1521, %v1523
      %v1530 = vadd.f32 %v1509, %v1524
      %v1531 = vadd.f32 %v1510, %v1525
      %v1532 = vadd.f32 %v1511, %v1526
      %1537 = vrot.lane.b32.xlu0 %v1319, 88
      %v1538 = vpop.permute.xlu0 %1537
      %1539 = vrot.lane.b32.xlu0 %v1321, 88
      %v1540 = vpop.permute.xlu0 %1539
      %1541 = vrot.lane.b32.xlu0 %v1414, 88
      %v1542 = vpop.permute.xlu0 %1541
      %1543 = vrot.lane.b32.xlu0 %v1416, 88
      %v1544 = vpop.permute.xlu0 %1543
      %v1545 = vsel %vm582, %v1538, %v1540
      %v1546 = vsel %vm582, %v1540, %v1542
      %v1547 = vsel %vm582, %v1542, %v1544
      %v1551 = vadd.f32 %v1530, %v1545
      %v1552 = vadd.f32 %v1531, %v1546
      %v1553 = vadd.f32 %v1532, %v1547
      %v1554 = vrot.slane %v1319, 4
      %v1555 = vrot.slane %v1321, 4
      %v1556 = vrot.slane %v1414, 4
      %v1557 = vrot.slane %v1416, 4
      %1558 = vrot.lane.b32.xlu0 %v1554, 87
      %v1559 = vpop.permute.xlu0 %1558
      %1560 = vrot.lane.b32.xlu0 %v1555, 87
      %v1561 = vpop.permute.xlu0 %1560
      %1562 = vrot.lane.b32.xlu0 %v1556, 87
      %v1563 = vpop.permute.xlu0 %1562
      %1564 = vrot.lane.b32.xlu0 %v1557, 87
      %v1565 = vpop.permute.xlu0 %1564
      %v1566 = vsel %vm601, %v1559, %v1561
      %v1567 = vsel %vm601, %v1561, %v1563
      %v1568 = vsel %vm601, %v1563, %v1565
      %v1572 = vadd.f32 %v1551, %v1566
      %v1573 = vadd.f32 %v1552, %v1567
      %v1574 = vadd.f32 %v1553, %v1568
      %1579 = vrot.lane.b32.xlu0 %v1325, 86
      %v1580 = vpop.permute.xlu0 %1579
      %1581 = vrot.lane.b32.xlu0 %v1327, 86
      %v1582 = vpop.permute.xlu0 %1581
      %1583 = vrot.lane.b32.xlu0 %v1420, 86
      %v1584 = vpop.permute.xlu0 %1583
      %1585 = vrot.lane.b32.xlu0 %v1422, 86
      %v1586 = vpop.permute.xlu0 %1585
      %v1587 = vsel %vm620, %v1580, %v1582
      %v1588 = vsel %vm620, %v1582, %v1584
      %v1589 = vsel %vm620, %v1584, %v1586
      %v1593 = vadd.f32 %v1572, %v1587
      %v1594 = vadd.f32 %v1573, %v1588
      %v1595 = vadd.f32 %v1574, %v1589
      %v1596 = vld [vmem:[%s8] sm:$0xf]
      %1598 = vset.pattern.permute.xlu0 0
      %1599 = vperm.xlu0 %1598, %v1596
      %v1600 = vpop.permute.xlu0 %1599
      %v1602 = vmul.f32 %v1593, %v1600
      %v1603 = vmul.f32 %v1594, %v1600
      %v1604 = vmul.f32 %v1595, %v1600
      %v1605 = vld [vmem:[%s413] sm:$0xff]
      %v1606 = vld [vmem:[%s413 + $0x8] sm:$0xf]
      %v1608 = vcombine.high %v1605, %v1605
      %v1610 = vadd.f32 %v1602, %v1605
      %v1611 = vadd.f32 %v1603, %v1608
      %v1612 = vadd.f32 %v1604, %v1606
      %v1613 = vadd.f32 %v1610, 2.0
      %v1614 = vadd.f32 %v1611, 2.0
      %v1615 = vadd.f32 %v1612, 2.0
      %v1616 = vxor.u32 %v1613, 2147483648
      %v1617 = vxor.u32 %v1614, 2147483648
      %v1618 = vxor.u32 %v1615, 2147483648
      %v1619 = vmul.f32 %v1616, 1.442695
      %v1620 = vpow.pop %v1619
      %v1621 = vmul.f32 %v1617, 1.442695
      %v1622 = vpow.pop %v1621
      %v1623 = vmul.f32 %v1618, 1.442695
      %v1624 = vpow.pop %v1623
      %v1625 = vadd.f32 %v1620, 1.0
      %v1626 = vadd.f32 %v1622, 1.0
      %v1627 = vadd.f32 %v1624, 1.0
      %v1628 = vrcp.pop %v1625
      %v1629 = vmul.f32 1.0, %v1628
      %v1630 = vrcp.pop %v1626
      %v1631 = vmul.f32 1.0, %v1630
      %v1632 = vrcp.pop %v1627
      %v1633 = vmul.f32 1.0, %v1632
      %v1634 = vld [vmem:[%s408] sm:$0x3f]
      %v1638 = vcombine.low %v1610, %v1611
      %v1640 = vunpack.c.l.s4 1983009808
      %v1641 = vunpack.c.0.s8 %v1640
      %v1642 = vlaneseq
      %v1643 = vshrl.u32 %v1642, 7
      %v1644 = vsub.s32 %v1641, %v1643
      %v1645 = vrot.slane %v1638, %v1644
      %v1647 = vunpack.c.l.s4 1983009808
      %v1648 = vunpack.c.0.s8 %v1647
      %v1649 = vlaneseq
      %v1650 = vshrl.u32 %v1649, 7
      %v1651 = vsub.s32 %v1648, %v1650
      %v1652 = vrot.slane %v1612, %v1651
      %v1653 = vcombine.high %v1645, %v1652
      %v1655 = vadd.f32 %v1634, %v1653
      %v1659 = vcombine.low %v1629, %v1631
      %v1661 = vunpack.c.l.s4 1983009808
      %v1662 = vunpack.c.0.s8 %v1661
      %v1663 = vlaneseq
      %v1664 = vshrl.u32 %v1663, 7
      %v1665 = vsub.s32 %v1662, %v1664
      %v1666 = vrot.slane %v1659, %v1665
      %v1668 = vunpack.c.l.s4 1983009808
      %v1669 = vunpack.c.0.s8 %v1668
      %v1670 = vlaneseq
      %v1671 = vshrl.u32 %v1670, 7
      %v1672 = vsub.s32 %v1669, %v1671
      %v1673 = vrot.slane %v1633, %v1672
      %v1674 = vcombine.low %v1666, %v1673
      %v1676 = vmul.f32 %v1655, %v1674
      %1677 = vst [vmem:[%s422] sm:$0x3f] %v1676
      %p1678 = scmp.lt.s32.totalorder %s24, 1
      %s1679 = scalar_select %p1678, %s24, 1
      %p1680 = scmp.lt.s32.totalorder %s25, 0
      %s1681 = scalar_select %p1680, %s25, 0
      %s1682 = smul.addr %s1681, 3
      %s1683 = smul.addr %s1679, 3
      %s1684 = sadd.s32 %s1682, %s1683
      %s1685 = smul.addr %s1684, 2
      %s1686 = scalar_lea.vmem %s9, %s1685
      // Predicated region
      $region57: #{affine_coupling_forward.1} parent=55 // pred_check
        %p1687 = pneg %p260
      $region58: #{affine_coupling_forward.1} parent=55 // pred_check_branch
        %1689 = sbr.rel (%p1687) target = $region60
      $region59: #{affine_coupling_forward.1} parent=55 // pred_region
        _
      $region60: #{affine_coupling_forward.1} parent=55 // pred_fallthru
        _
    $region56: #{affine_coupling_forward.1} parent=5 // pred_fallthru
      _
    %p1690 = scmp.le.s32.totalorder 2, %s15
    // Predicated region
    $region61: #{affine_coupling_forward.1} parent=5 // pred_check
      %p1691 = pneg %p1690
    $region62: #{affine_coupling_forward.1} parent=5 // pred_check_branch
      %1693 = sbr.rel (%p1691) target = $region64
    $region63: #{affine_coupling_forward.1} parent=5 // pred_region
      %s1694 = ssub.s32 %s15, 2
      // Predicated region
      $region65: #{affine_coupling_forward.1} parent=63 // pred_check
        %p1695 = pneg %p266
      $region66: #{affine_coupling_forward.1} parent=63 // pred_check_branch
        %1697 = sbr.rel (%p1695) target = $region68
      $region67: #{affine_coupling_forward.1} parent=63 // pred_region
        %p1698 = scmp.lt.s32.totalorder %s26, 1
        %s1699 = scalar_select %p1698, %s26, 1
        %p1700 = scmp.lt.s32.totalorder %s27, 0
        %s1701 = scalar_select %p1700, %s27, 0
        %s1702 = smul.addr %s1701, 3
        %s1703 = smul.addr %s1699, 3
        %s1704 = sadd.s32 %s1702, %s1703
        %s1705 = smul.addr %s1704, 2
        %s1706 = scalar_lea.vmem %s9, %s1705
      $region68: #{affine_coupling_forward.1} parent=63 // pred_fallthru
        _
    $region64: #{affine_coupling_forward.1} parent=5 // pred_fallthru
      _
  $region6: #{affine_coupling_forward.1} parent=0 // loop_footer
    %s19 = sadd.s32 1, %s15
  $region7: #{affine_coupling_forward.1} parent=0 // loop_footer_branch
    %14 = sbr.rel target = $region3
  $region8: #{affine_coupling_forward.1} parent=0 // loop_exit
    _

</llo_original>
